<compile_context>
chip_gen: v7x
topology: tpu7x:2x2x1
jax: 0.10.0
libtpu: 0.0.40
codegen_flags: <defaults>
</compile_context>

<pallas_src>
import functools
import math

import jax
import jax.numpy as jnp
from jax.experimental import pallas as pl
from jax.experimental.pallas import tpu as pltpu


def _gelu_tanh(x):
    # 0.5 * x * (1 + tanh(sqrt(2/pi) * (x + 0.044715 * x^3)))
    c = math.sqrt(2.0 / math.pi)
    return 0.5 * x * (1.0 + jnp.tanh(c * (x + 0.044715 * x * x * x)))


def _layernorm(x, gamma, beta, eps=1e-5):
    # x: (T, D) f32; gamma/beta: (1, D) f32; unbiased=False variance
    mean = jnp.mean(x, axis=-1, keepdims=True)
    var = jnp.mean((x - mean) ** 2, axis=-1, keepdims=True)
    return (x - mean) * jax.lax.rsqrt(var + eps) * gamma + beta


def transformer_block_kernel(
    x_ref,
    wqkv_ref,                      # (D, 3D): [Wq | Wk | Wv], head-major cols,
                                   #          1/sqrt(d_out) folded into Wq
    wo_ref, bo_ref,                # (D, D), (1, D)
    w1_ref, b1_ref, w2_ref, b2_ref,
    g1_ref, s1_ref, g2_ref, s2_ref,
    o_ref,
    *, num_heads,
):
    f32 = jnp.float32
    x = x_ref[0].astype(f32)                      # (T, D) residual stream, f32
    T, D = x.shape
    H = num_heads
    hd = D // H
    cdt = wqkv_ref.dtype                          # MXU operand dtype (f32 / bf16)
    approx_recip = bool(cdt != jnp.float32)

    # ---- LayerNorm 1 (f32 statistics) ----
    xn = _layernorm(x, g1_ref[...].astype(f32), s1_ref[...].astype(f32)).astype(cdt)

    # ---- Fused QKV projection: one wide (T,D)@(D,3D) MXU matmul ----
    qkv = jnp.dot(xn, wqkv_ref[...], preferred_element_type=cdt)      # (T, 3D) cdt

    # Head relayout (T, 3D) -> (3H, T, hd): static lane slices + leading-axis
    # stack (at realistic hd = multiples of 128 these are aligned lane moves).
    qkvh = jnp.stack(
        [qkv[:, j * hd:(j + 1) * hd] for j in range(3 * H)], axis=0)  # (3H, T, hd)
    q = qkvh[:H]
    k = qkvh[H:2 * H]
    v = qkvh[2 * H:]

    # ---- Causal multi-head attention (leading-head batched einsums) ----
    scores = jnp.einsum("hqd,hkd->hqk", q, k,
                        preferred_element_type=f32)                   # (H, T, T) f32

    row = jax.lax.broadcasted_iota(jnp.int32, (T, T), 0)
    col = jax.lax.broadcasted_iota(jnp.int32, (T, T), 1)
    scores = jnp.where((col > row)[None, :, :], f32(-1e30), scores)

    m = jnp.max(scores, axis=-1, keepdims=True)                       # (H, T, 1)
    e = jnp.exp(scores - m)
    denom = jnp.sum(e, axis=-1, keepdims=True)                        # (H, T, 1)

    # Un-normalized PV matmul, then normalize the small (H,T,hd) result.
    ctx = jnp.einsum("hqk,hkd->hqd", e.astype(cdt), v,
                     preferred_element_type=f32)                      # (H, T, hd) f32
    ctx = ctx * pl.reciprocal(denom, approx=approx_recip)

    # ---- Output projection: heads re-assembled along lanes, one wide
    # (T,D)@(D,D) matmul (contract K=D; no per-head partials / sum). ----
    ctx_c = ctx.astype(cdt)
    ctx2d = jnp.concatenate([ctx_c[h] for h in range(H)], axis=1)     # (T, D) cdt
    attn_out = jnp.dot(ctx2d, wo_ref[...], preferred_element_type=f32)
    attn_out = attn_out + bo_ref[...].astype(f32)

    # TODO(synk): dropout (drop_rate) is identity at eval / rate 0.0.
    x1 = x + attn_out                                                  # residual 1

    # ---- LayerNorm 2 + FeedForward (GELU tanh) ----
    x2 = _layernorm(x1, g2_ref[...].astype(f32), s2_ref[...].astype(f32)).astype(cdt)
    h1 = jnp.dot(x2, w1_ref[...], preferred_element_type=f32) + b1_ref[...].astype(f32)
    h1 = _gelu_tanh(h1).astype(cdt)
    ff = jnp.dot(h1, w2_ref[...], preferred_element_type=f32) + b2_ref[...].astype(f32)

    o_ref[0] = (x1 + ff).astype(o_ref.dtype)                          # residual 2


def _vmem_limit_bytes(T, D, H, itemsize):
    h4 = 4 * D
    # Pipeline-resident operands (BlockSpec double-buffers each by default).
    weights = (3 * D * D + D * D + 2 * D * h4 + h4 + 6 * D) * itemsize
    act_io = 2 * T * D * itemsize
    resident = 2 * (weights + act_io)
    # In-kernel intermediates.
    work = (2 * (3 * T * D) * itemsize       # fused qkv + head-stacked copy
            + 2 * H * T * T * 4              # scores + exp (f32)
            + 2 * T * D * 4                  # ctx f32 (+ slack)
            + 2 * T * D * itemsize           # ctx cast + lane concat
            + 6 * T * D * 4                  # xn, attn_out, x1, x2, ff, out
            + 2 * T * h4 * 4)                # FFN hidden pre/post GELU
    est = int(1.5 * (resident + work)) + (1 << 20)
    try:
        # ~15% headroom for compiler scratch / semaphores / pipeline buffers:
        # stays under 64 MiB on v7x, exploits 128 MiB on v5e/v6e.
        cap = int(0.85 * pltpu.get_tpu_info().vmem_capacity_bytes)
    except Exception:
        cap = int(0.85 * (64 << 20))         # conservative, valid everywhere
    return min(max(est, 32 << 20), cap)


def prepare_params(params, num_heads):
    """One-time parameter preparation (hoisted out of the per-step call):
    fuse Wq|Wk|Wv into a single (D, 3D) matrix (head-major columns) and fold
    the 1/sqrt(d_out) softmax scale into the Q columns."""
    del num_heads  # columns are already head-major in (in, out) layout
    D = params["wq"].shape[0]
    f32 = jnp.float32
    wq_scaled = (params["wq"].astype(f32) * (float(D) ** -0.5)).astype(params["wq"].dtype)
    wqkv = jnp.concatenate([wq_scaled, params["wk"], params["wv"]], axis=1)  # (D, 3D)
    return {
        "wqkv": wqkv,
        "wo": params["wo"], "bo": params["bo"],
        "w1": params["w1"], "b1": params["b1"],
        "w2": params["w2"], "b2": params["b2"],
        "g1": params["g1"], "s1": params["s1"],
        "g2": params["g2"], "s2": params["s2"],
    }


def transformer_block(x, prepped, num_heads):
    B, T, D = x.shape
    assert D % num_heads == 0
    H4 = 4 * D

    def const_spec(shape):
        n = len(shape)
        # Constant across the batch grid; Pallas does not re-DMA it per step.
        # TODO(synk): single-buffer via pipeline_mode=pl.Buffered(1) (or stage
        # once into VMEM scratch) to halve resident weight VMEM on v7x.
        return pl.BlockSpec(shape, lambda b: (0,) * n)

    in_specs = [
        pl.BlockSpec((1, T, D), lambda b: (b, 0, 0)),   # x
        const_spec((D, 3 * D)),                         # fused Wqkv
        const_spec((D, D)),                             # Wo
        const_spec((1, D)),                             # bo
        const_spec((D, H4)),                            # W1
        const_spec((1, H4)),                            # b1
        const_spec((H4, D)),                            # W2
        const_spec((1, D)),                             # b2
        const_spec((1, D)),                             # ln1 scale
        const_spec((1, D)),                             # ln1 shift
        const_spec((1, D)),                             # ln2 scale
        const_spec((1, D)),                             # ln2 shift
    ]

    kernel = functools.partial(transformer_block_kernel, num_heads=num_heads)

    # TODO(synk): add a parallel q-tile grid axis + flash-style k-tiling with
    # causal block skipping for realistic T (keeps v7x's 64 MiB VMEM happy).
    return pl.pallas_call(
        kernel,
        out_shape=jax.ShapeDtypeStruct((B, T, D), x.dtype),
        grid_spec=pltpu.PrefetchScalarGridSpec(
            num_scalar_prefetch=0,
            grid=(B,),
            in_specs=in_specs,
            out_specs=pl.BlockSpec((1, T, D), lambda b: (b, 0, 0)),
        ),
        compiler_params=pltpu.CompilerParams(
            dimension_semantics=("parallel",),          # megacore on v7x
            vmem_limit_bytes=_vmem_limit_bytes(T, D, num_heads,
                                               x.dtype.itemsize),
        ),
    )(
        x,
        prepped["wqkv"], prepped["wo"], prepped["bo"],
        prepped["w1"], prepped["b1"], prepped["w2"], prepped["b2"],
        prepped["g1"], prepped["s1"], prepped["g2"], prepped["s2"],
    )


# ---------------- pure-JAX reference (for correctness check) ----------------
def reference_block(x, p, num_heads):
    B, T, D = x.shape
    hd = D // num_heads

    def ln(y, g, s):
        m = jnp.mean(y, axis=-1, keepdims=True)
        v = jnp.mean((y - m) ** 2, axis=-1, keepdims=True)
        return (y - m) / jnp.sqrt(v + 1e-5) * g + s

    xn = ln(x, p["g1"][0], p["s1"][0])
    q = xn @ p["wq"]
    k = xn @ p["wk"]
    v = xn @ p["wv"]
    q = q.reshape(B, T, num_heads, hd).transpose(0, 2, 1, 3)
    k = k.reshape(B, T, num_heads, hd).transpose(0, 2, 1, 3)
    v = v.reshape(B, T, num_heads, hd).transpose(0, 2, 1, 3)
    scores = q @ jnp.swapaxes(k, -1, -2)
    mask = jnp.triu(jnp.ones((T, T), bool), k=1)
    scores = jnp.where(mask, -jnp.inf, scores)
    w = jax.nn.softmax(scores / jnp.sqrt(jnp.float32(D)), axis=-1)
    ctx = (w @ v).transpose(0, 2, 1, 3).reshape(B, T, D)
    attn_out = ctx @ p["wo"] + p["bo"][0]
    x1 = x + attn_out
    x2 = ln(x1, p["g2"][0], p["s2"][0])
    h = x2 @ p["w1"] + p["b1"][0]
    c = jnp.sqrt(jnp.float32(2.0 / jnp.pi))
    h = 0.5 * h * (1.0 + jnp.tanh(c * (h + 0.044715 * h ** 3)))
    ff = h @ p["w2"] + p["b2"][0]
    return x1 + ff


if __name__ == "__main__":
    # cfg: emb_dim=32, context_length=8, n_heads=4, drop_rate=0.0, qkv_bias=False
    B, T, D, H = 2, 8, 32, 4
    H4 = 4 * D

    key = jax.random.PRNGKey(0)
    ks = jax.random.split(key, 10)
    scale = 0.05
    params = {
        "wq": scale * jax.random.normal(ks[0], (D, D), jnp.float32),
        "wk": scale * jax.random.normal(ks[1], (D, D), jnp.float32),
        "wv": scale * jax.random.normal(ks[2], (D, D), jnp.float32),
        "wo": scale * jax.random.normal(ks[3], (D, D), jnp.float32),
        "bo": scale * jax.random.normal(ks[4], (1, D), jnp.float32),
        "w1": scale * jax.random.normal(ks[5], (D, H4), jnp.float32),
        "b1": scale * jax.random.normal(ks[6], (1, H4), jnp.float32),
        "w2": scale * jax.random.normal(ks[7], (H4, D), jnp.float32),
        "b2": scale * jax.random.normal(ks[8], (1, D), jnp.float32),
        "g1": jnp.ones((1, D), jnp.float32),
        "s1": jnp.zeros((1, D), jnp.float32),
        "g2": jnp.ones((1, D), jnp.float32),
        "s2": jnp.zeros((1, D), jnp.float32),
    }
    x = jax.random.normal(ks[9], (B, T, D), jnp.float32)

    ref = reference_block(x, params, num_heads=H)

    # 1) Exact path: f32 operands, f32 accumulation. Parameter prep happens
    #    ONCE, outside the per-step call path.
    prepped = prepare_params(params, num_heads=H)
    out = jax.block_until_ready(transformer_block(x, prepped, num_heads=H))
    assert out.shape == (B, T, D)
    err = float(jnp.max(jnp.abs(out - ref)))
    assert jnp.allclose(out, ref, atol=1e-3, rtol=1e-3), err

    # 2) Fast path: bf16 MXU operands, f32 LayerNorm / softmax statistics and
    #    f32 accumulation for scores / PV / out-proj / FFN.
    params_bf = jax.tree_util.tree_map(lambda a: a.astype(jnp.bfloat16), params)
    prepped_bf = prepare_params(params_bf, num_heads=H)
    x_bf = x.astype(jnp.bfloat16)
    out_bf = jax.block_until_ready(transformer_block(x_bf, prepped_bf, num_heads=H))
    assert out_bf.shape == (B, T, D) and out_bf.dtype == jnp.bfloat16
    err_bf = float(jnp.max(jnp.abs(out_bf.astype(jnp.float32) - ref)))
    assert jnp.allclose(out_bf.astype(jnp.float32), ref, atol=5e-2, rtol=5e-2), err_bf

    print("KERNEL_OK")
</pallas_src>

<mosaic_0001>
module attributes {stable_mosaic.version = 11 : i64} {
  func.func @transformer_block_kernel(%arg0: i32, %arg1: memref<1x8x32xf32, #tpu.memory_space<vmem>>, %arg2: memref<32x96xf32, #tpu.memory_space<vmem>>, %arg3: memref<32x32xf32, #tpu.memory_space<vmem>>, %arg4: memref<1x32xf32, #tpu.memory_space<vmem>>, %arg5: memref<32x128xf32, #tpu.memory_space<vmem>>, %arg6: memref<1x128xf32, #tpu.memory_space<vmem>>, %arg7: memref<128x32xf32, #tpu.memory_space<vmem>>, %arg8: memref<1x32xf32, #tpu.memory_space<vmem>>, %arg9: memref<1x32xf32, #tpu.memory_space<vmem>>, %arg10: memref<1x32xf32, #tpu.memory_space<vmem>>, %arg11: memref<1x32xf32, #tpu.memory_space<vmem>>, %arg12: memref<1x32xf32, #tpu.memory_space<vmem>>, %arg13: memref<1x8x32xf32, #tpu.memory_space<vmem>>) attributes {dimension_semantics = [#tpu.dimension_semantics<parallel>], iteration_bounds = array<i64: 2>, scalar_prefetch = 0 : i64, scratch_operands = 0 : i64, tpu.core_type = #tpu.core_type<tc>, window_params = [{transform_indices = @transform_0, window_bounds = array<i64: 1, 8, 32>}, {pipeline_mode = #tpu.pipeline_mode<synchronous>, transform_indices = @transform_1, window_bounds = array<i64: 32, 96>}, {pipeline_mode = #tpu.pipeline_mode<synchronous>, transform_indices = @transform_2, window_bounds = array<i64: 32, 32>}, {pipeline_mode = #tpu.pipeline_mode<synchronous>, transform_indices = @transform_3, window_bounds = array<i64: 1, 32>}, {pipeline_mode = #tpu.pipeline_mode<synchronous>, transform_indices = @transform_4, window_bounds = array<i64: 32, 128>}, {pipeline_mode = #tpu.pipeline_mode<synchronous>, transform_indices = @transform_5, window_bounds = array<i64: 1, 128>}, {pipeline_mode = #tpu.pipeline_mode<synchronous>, transform_indices = @transform_6, window_bounds = array<i64: 128, 32>}, {pipeline_mode = #tpu.pipeline_mode<synchronous>, transform_indices = @transform_7, window_bounds = array<i64: 1, 32>}, {pipeline_mode = #tpu.pipeline_mode<synchronous>, transform_indices = @transform_8, window_bounds = array<i64: 1, 32>}, {pipeline_mode = #tpu.pipeline_mode<synchronous>, transform_indices = @transform_9, window_bounds = array<i64: 1, 32>}, {pipeline_mode = #tpu.pipeline_mode<synchronous>, transform_indices = @transform_10, window_bounds = array<i64: 1, 32>}, {pipeline_mode = #tpu.pipeline_mode<synchronous>, transform_indices = @transform_11, window_bounds = array<i64: 1, 32>}, {transform_indices = @transform_12, window_bounds = array<i64: 1, 8, 32>}]} {
    %c0 = arith.constant 0 : index
    %c0_0 = arith.constant 0 : index
    %c0_1 = arith.constant 0 : index
    %0 = vector.load %arg1[%c0, %c0_0, %c0_1] : memref<1x8x32xf32, #tpu.memory_space<vmem>>, vector<1x8x32xf32>
    %1 = vector.shape_cast %0 : vector<1x8x32xf32> to vector<8x32xf32>
    %c0_2 = arith.constant 0 : index
    %c0_3 = arith.constant 0 : index
    %2 = vector.load %arg9[%c0_2, %c0_3] : memref<1x32xf32, #tpu.memory_space<vmem>>, vector<1x32xf32>
    %c0_4 = arith.constant 0 : index
    %c0_5 = arith.constant 0 : index
    %3 = vector.load %arg10[%c0_4, %c0_5] : memref<1x32xf32, #tpu.memory_space<vmem>>, vector<1x32xf32>
    %cst = arith.constant dense<0.000000e+00> : vector<8xf32>
    %4 = vector.multi_reduction <add>, %1, %cst [1] : vector<8x32xf32> to vector<8xf32>
    %5 = vector.shape_cast %4 : vector<8xf32> to vector<8x1xf32>
    %cst_6 = arith.constant 3.200000e+01 : f32
    %6 = vector.broadcast %cst_6 : f32 to vector<8x1xf32>
    %7 = arith.divf %5, %6 : vector<8x1xf32>
    %8 = vector.broadcast %7 : vector<8x1xf32> to vector<8x32xf32>
    %9 = arith.subf %1, %8 : vector<8x32xf32>
    %10 = arith.mulf %9, %9 : vector<8x32xf32>
    %cst_7 = arith.constant dense<0.000000e+00> : vector<8xf32>
    %11 = vector.multi_reduction <add>, %10, %cst_7 [1] : vector<8x32xf32> to vector<8xf32>
    %12 = vector.shape_cast %11 : vector<8xf32> to vector<8x1xf32>
    %cst_8 = arith.constant 3.200000e+01 : f32
    %13 = vector.broadcast %cst_8 : f32 to vector<8x1xf32>
    %14 = arith.divf %12, %13 : vector<8x1xf32>
    %15 = vector.broadcast %7 : vector<8x1xf32> to vector<8x32xf32>
    %16 = arith.subf %1, %15 : vector<8x32xf32>
    %cst_9 = arith.constant 9.99999974E-6 : f32
    %17 = vector.broadcast %cst_9 : f32 to vector<8x1xf32>
    %18 = arith.addf %14, %17 : vector<8x1xf32>
    %19 = math.rsqrt %18 : vector<8x1xf32>
    %20 = vector.broadcast %19 : vector<8x1xf32> to vector<8x32xf32>
    %21 = arith.mulf %16, %20 : vector<8x32xf32>
    %22 = vector.broadcast %2 : vector<1x32xf32> to vector<8x32xf32>
    %23 = arith.mulf %21, %22 : vector<8x32xf32>
    %24 = vector.broadcast %3 : vector<1x32xf32> to vector<8x32xf32>
    %25 = arith.addf %23, %24 : vector<8x32xf32>
    %c0_10 = arith.constant 0 : index
    %c0_11 = arith.constant 0 : index
    %26 = vector.load %arg2[%c0_10, %c0_11] : memref<32x96xf32, #tpu.memory_space<vmem>>, vector<32x96xf32>
    %cst_12 = arith.constant dense<0.000000e+00> : vector<8x96xf32>
    %27 = tpu.matmul %25, %26, %cst_12 {dimension_numbers = #tpu.dot_dimension_numbers<[1], [0], [0], [1], [0, 0, 1, 1], [], []>} : vector<8x32xf32>, vector<32x96xf32>, vector<8x96xf32> -> vector<8x96xf32>
    %28 = vector.extract_strided_slice %27 {offsets = [0, 0], sizes = [8, 8], strides = [1, 1]} : vector<8x96xf32> to vector<8x8xf32>
    %29 = vector.extract_strided_slice %27 {offsets = [0, 8], sizes = [8, 8], strides = [1, 1]} : vector<8x96xf32> to vector<8x8xf32>
    %30 = vector.extract_strided_slice %27 {offsets = [0, 16], sizes = [8, 8], strides = [1, 1]} : vector<8x96xf32> to vector<8x8xf32>
    %31 = vector.extract_strided_slice %27 {offsets = [0, 24], sizes = [8, 8], strides = [1, 1]} : vector<8x96xf32> to vector<8x8xf32>
    %32 = vector.extract_strided_slice %27 {offsets = [0, 32], sizes = [8, 8], strides = [1, 1]} : vector<8x96xf32> to vector<8x8xf32>
    %33 = vector.extract_strided_slice %27 {offsets = [0, 40], sizes = [8, 8], strides = [1, 1]} : vector<8x96xf32> to vector<8x8xf32>
    %34 = vector.extract_strided_slice %27 {offsets = [0, 48], sizes = [8, 8], strides = [1, 1]} : vector<8x96xf32> to vector<8x8xf32>
    %35 = vector.extract_strided_slice %27 {offsets = [0, 56], sizes = [8, 8], strides = [1, 1]} : vector<8x96xf32> to vector<8x8xf32>
    %36 = vector.extract_strided_slice %27 {offsets = [0, 64], sizes = [8, 8], strides = [1, 1]} : vector<8x96xf32> to vector<8x8xf32>
    %37 = vector.extract_strided_slice %27 {offsets = [0, 72], sizes = [8, 8], strides = [1, 1]} : vector<8x96xf32> to vector<8x8xf32>
    %38 = vector.extract_strided_slice %27 {offsets = [0, 80], sizes = [8, 8], strides = [1, 1]} : vector<8x96xf32> to vector<8x8xf32>
    %39 = vector.extract_strided_slice %27 {offsets = [0, 88], sizes = [8, 8], strides = [1, 1]} : vector<8x96xf32> to vector<8x8xf32>
    %40 = vector.shape_cast %28 : vector<8x8xf32> to vector<1x8x8xf32>
    %41 = vector.shape_cast %29 : vector<8x8xf32> to vector<1x8x8xf32>
    %42 = vector.shape_cast %30 : vector<8x8xf32> to vector<1x8x8xf32>
    %43 = vector.shape_cast %31 : vector<8x8xf32> to vector<1x8x8xf32>
    %44 = vector.shape_cast %32 : vector<8x8xf32> to vector<1x8x8xf32>
    %45 = vector.shape_cast %33 : vector<8x8xf32> to vector<1x8x8xf32>
    %46 = vector.shape_cast %34 : vector<8x8xf32> to vector<1x8x8xf32>
    %47 = vector.shape_cast %35 : vector<8x8xf32> to vector<1x8x8xf32>
    %48 = vector.shape_cast %36 : vector<8x8xf32> to vector<1x8x8xf32>
    %49 = vector.shape_cast %37 : vector<8x8xf32> to vector<1x8x8xf32>
    %50 = vector.shape_cast %38 : vector<8x8xf32> to vector<1x8x8xf32>
    %51 = vector.shape_cast %39 : vector<8x8xf32> to vector<1x8x8xf32>
    %52 = tpu.concatenate %40, %41, %42, %43, %44, %45, %46, %47, %48, %49, %50, %51 in 0 : vector<1x8x8xf32>, vector<1x8x8xf32>, vector<1x8x8xf32>, vector<1x8x8xf32>, vector<1x8x8xf32>, vector<1x8x8xf32>, vector<1x8x8xf32>, vector<1x8x8xf32>, vector<1x8x8xf32>, vector<1x8x8xf32>, vector<1x8x8xf32>, vector<1x8x8xf32> -> vector<12x8x8xf32>
    %53 = vector.extract_strided_slice %52 {offsets = [0, 0, 0], sizes = [4, 8, 8], strides = [1, 1, 1]} : vector<12x8x8xf32> to vector<4x8x8xf32>
    %54 = vector.extract_strided_slice %52 {offsets = [4, 0, 0], sizes = [4, 8, 8], strides = [1, 1, 1]} : vector<12x8x8xf32> to vector<4x8x8xf32>
    %55 = vector.extract_strided_slice %52 {offsets = [8, 0, 0], sizes = [4, 8, 8], strides = [1, 1, 1]} : vector<12x8x8xf32> to vector<4x8x8xf32>
    "tpu.trace_start"() <{level = 10 : i32, message = "hqd,hkd->hqk"}> : () -> ()
    %cst_13 = arith.constant dense<0.000000e+00> : vector<4x8x8xf32>
    %56 = tpu.matmul %53, %54, %cst_13 {dimension_numbers = #tpu.dot_dimension_numbers<[2], [2], [1], [1], [0, 0, 0, 1, 1, 1], [0], [0]>} : vector<4x8x8xf32>, vector<4x8x8xf32>, vector<4x8x8xf32> -> vector<4x8x8xf32>
    "tpu.trace_stop"() : () -> ()
    %57 = tpu.iota {dimensions = array<i32: 0>} : vector<8x8xi32>
    %58 = tpu.iota {dimensions = array<i32: 1>} : vector<8x8xi32>
    %59 = arith.cmpi sgt, %58, %57 : vector<8x8xi32>
    %60 = vector.shape_cast %59 : vector<8x8xi1> to vector<1x8x8xi1>
    %cst_14 = arith.constant -1.000000e+30 : f32
    %61 = vector.shape_cast %60 : vector<1x8x8xi1> to vector<1x8x8xi1>
    %62 = vector.broadcast %61 : vector<1x8x8xi1> to vector<4x8x8xi1>
    %63 = vector.broadcast %cst_14 : f32 to vector<4x8x8xf32>
    %64 = arith.select %62, %63, %56 : vector<4x8x8xi1>, vector<4x8x8xf32>
    %cst_15 = arith.constant dense<0xFF800000> : vector<4x8xf32>
    %65 = vector.multi_reduction <maximumf>, %64, %cst_15 [2] : vector<4x8x8xf32> to vector<4x8xf32>
    %66 = vector.shape_cast %65 : vector<4x8xf32> to vector<4x8x1xf32>
    %67 = vector.broadcast %66 : vector<4x8x1xf32> to vector<4x8x8xf32>
    %68 = arith.subf %64, %67 : vector<4x8x8xf32>
    %69 = math.exp %68 : vector<4x8x8xf32>
    %cst_16 = arith.constant dense<0.000000e+00> : vector<4x8xf32>
    %70 = vector.multi_reduction <add>, %69, %cst_16 [2] : vector<4x8x8xf32> to vector<4x8xf32>
    %71 = vector.shape_cast %70 : vector<4x8xf32> to vector<4x8x1xf32>
    "tpu.trace_start"() <{level = 10 : i32, message = "hqk,hkd->hqd"}> : () -> ()
    %cst_17 = arith.constant dense<0.000000e+00> : vector<4x8x8xf32>
    %72 = tpu.matmul %69, %55, %cst_17 {dimension_numbers = #tpu.dot_dimension_numbers<[2], [1], [1], [2], [0, 0, 0, 1, 1, 2], [0], [0]>} : vector<4x8x8xf32>, vector<4x8x8xf32>, vector<4x8x8xf32> -> vector<4x8x8xf32>
    "tpu.trace_stop"() : () -> ()
    %73 = tpu.reciprocal %71 : vector<4x8x1xf32> -> vector<4x8x1xf32>
    %74 = vector.broadcast %73 : vector<4x8x1xf32> to vector<4x8x8xf32>
    %75 = arith.mulf %72, %74 : vector<4x8x8xf32>
    %76 = vector.extract_strided_slice %75 {offsets = [0, 0, 0], sizes = [1, 8, 8], strides = [1, 1, 1]} : vector<4x8x8xf32> to vector<1x8x8xf32>
    %77 = vector.shape_cast %76 : vector<1x8x8xf32> to vector<8x8xf32>
    %78 = vector.extract_strided_slice %75 {offsets = [1, 0, 0], sizes = [1, 8, 8], strides = [1, 1, 1]} : vector<4x8x8xf32> to vector<1x8x8xf32>
    %79 = vector.shape_cast %78 : vector<1x8x8xf32> to vector<8x8xf32>
    %80 = vector.extract_strided_slice %75 {offsets = [2, 0, 0], sizes = [1, 8, 8], strides = [1, 1, 1]} : vector<4x8x8xf32> to vector<1x8x8xf32>
    %81 = vector.shape_cast %80 : vector<1x8x8xf32> to vector<8x8xf32>
    %82 = vector.extract_strided_slice %75 {offsets = [3, 0, 0], sizes = [1, 8, 8], strides = [1, 1, 1]} : vector<4x8x8xf32> to vector<1x8x8xf32>
    %83 = vector.shape_cast %82 : vector<1x8x8xf32> to vector<8x8xf32>
    %84 = tpu.concatenate %77, %79, %81, %83 in 1 : vector<8x8xf32>, vector<8x8xf32>, vector<8x8xf32>, vector<8x8xf32> -> vector<8x32xf32>
    %c0_18 = arith.constant 0 : index
    %c0_19 = arith.constant 0 : index
    %85 = vector.load %arg3[%c0_18, %c0_19] : memref<32x32xf32, #tpu.memory_space<vmem>>, vector<32x32xf32>
    %cst_20 = arith.constant dense<0.000000e+00> : vector<8x32xf32>
    %86 = tpu.matmul %84, %85, %cst_20 {dimension_numbers = #tpu.dot_dimension_numbers<[1], [0], [0], [1], [0, 0, 1, 1], [], []>} : vector<8x32xf32>, vector<32x32xf32>, vector<8x32xf32> -> vector<8x32xf32>
    %c0_21 = arith.constant 0 : index
    %c0_22 = arith.constant 0 : index
    %87 = vector.load %arg4[%c0_21, %c0_22] : memref<1x32xf32, #tpu.memory_space<vmem>>, vector<1x32xf32>
    %88 = vector.broadcast %87 : vector<1x32xf32> to vector<8x32xf32>
    %89 = arith.addf %86, %88 : vector<8x32xf32>
    %90 = arith.addf %1, %89 : vector<8x32xf32>
    %c0_23 = arith.constant 0 : index
    %c0_24 = arith.constant 0 : index
    %91 = vector.load %arg11[%c0_23, %c0_24] : memref<1x32xf32, #tpu.memory_space<vmem>>, vector<1x32xf32>
    %c0_25 = arith.constant 0 : index
    %c0_26 = arith.constant 0 : index
    %92 = vector.load %arg12[%c0_25, %c0_26] : memref<1x32xf32, #tpu.memory_space<vmem>>, vector<1x32xf32>
    %cst_27 = arith.constant dense<0.000000e+00> : vector<8xf32>
    %93 = vector.multi_reduction <add>, %90, %cst_27 [1] : vector<8x32xf32> to vector<8xf32>
    %94 = vector.shape_cast %93 : vector<8xf32> to vector<8x1xf32>
    %cst_28 = arith.constant 3.200000e+01 : f32
    %95 = vector.broadcast %cst_28 : f32 to vector<8x1xf32>
    %96 = arith.divf %94, %95 : vector<8x1xf32>
    %97 = vector.broadcast %96 : vector<8x1xf32> to vector<8x32xf32>
    %98 = arith.subf %90, %97 : vector<8x32xf32>
    %99 = arith.mulf %98, %98 : vector<8x32xf32>
    %cst_29 = arith.constant dense<0.000000e+00> : vector<8xf32>
    %100 = vector.multi_reduction <add>, %99, %cst_29 [1] : vector<8x32xf32> to vector<8xf32>
    %101 = vector.shape_cast %100 : vector<8xf32> to vector<8x1xf32>
    %cst_30 = arith.constant 3.200000e+01 : f32
    %102 = vector.broadcast %cst_30 : f32 to vector<8x1xf32>
    %103 = arith.divf %101, %102 : vector<8x1xf32>
    %104 = vector.broadcast %96 : vector<8x1xf32> to vector<8x32xf32>
    %105 = arith.subf %90, %104 : vector<8x32xf32>
    %cst_31 = arith.constant 9.99999974E-6 : f32
    %106 = vector.broadcast %cst_31 : f32 to vector<8x1xf32>
    %107 = arith.addf %103, %106 : vector<8x1xf32>
    %108 = math.rsqrt %107 : vector<8x1xf32>
    %109 = vector.broadcast %108 : vector<8x1xf32> to vector<8x32xf32>
    %110 = arith.mulf %105, %109 : vector<8x32xf32>
    %111 = vector.broadcast %91 : vector<1x32xf32> to vector<8x32xf32>
    %112 = arith.mulf %110, %111 : vector<8x32xf32>
    %113 = vector.broadcast %92 : vector<1x32xf32> to vector<8x32xf32>
    %114 = arith.addf %112, %113 : vector<8x32xf32>
    %c0_32 = arith.constant 0 : index
    %c0_33 = arith.constant 0 : index
    %115 = vector.load %arg5[%c0_32, %c0_33] : memref<32x128xf32, #tpu.memory_space<vmem>>, vector<32x128xf32>
    %cst_34 = arith.constant dense<0.000000e+00> : vector<8x128xf32>
    %116 = tpu.matmul %114, %115, %cst_34 {dimension_numbers = #tpu.dot_dimension_numbers<[1], [0], [0], [1], [0, 0, 1, 1], [], []>} : vector<8x32xf32>, vector<32x128xf32>, vector<8x128xf32> -> vector<8x128xf32>
    %c0_35 = arith.constant 0 : index
    %c0_36 = arith.constant 0 : index
    %117 = vector.load %arg6[%c0_35, %c0_36] : memref<1x128xf32, #tpu.memory_space<vmem>>, vector<1x128xf32>
    %118 = vector.broadcast %117 : vector<1x128xf32> to vector<8x128xf32>
    %119 = arith.addf %116, %118 : vector<8x128xf32>
    %cst_37 = arith.constant 5.000000e-01 : f32
    %120 = vector.broadcast %cst_37 : f32 to vector<8x128xf32>
    %121 = arith.mulf %120, %119 : vector<8x128xf32>
    %cst_38 = arith.constant 4.471500e-02 : f32
    %122 = vector.broadcast %cst_38 : f32 to vector<8x128xf32>
    %123 = arith.mulf %122, %119 : vector<8x128xf32>
    %124 = arith.mulf %123, %119 : vector<8x128xf32>
    %125 = arith.mulf %124, %119 : vector<8x128xf32>
    %126 = arith.addf %119, %125 : vector<8x128xf32>
    %cst_39 = arith.constant 0.797884583 : f32
    %127 = vector.broadcast %cst_39 : f32 to vector<8x128xf32>
    %128 = arith.mulf %127, %126 : vector<8x128xf32>
    %129 = math.tanh %128 : vector<8x128xf32>
    %cst_40 = arith.constant 1.000000e+00 : f32
    %130 = vector.broadcast %cst_40 : f32 to vector<8x128xf32>
    %131 = arith.addf %130, %129 : vector<8x128xf32>
    %132 = arith.mulf %121, %131 : vector<8x128xf32>
    %c0_41 = arith.constant 0 : index
    %c0_42 = arith.constant 0 : index
    %133 = vector.load %arg7[%c0_41, %c0_42] : memref<128x32xf32, #tpu.memory_space<vmem>>, vector<128x32xf32>
    %cst_43 = arith.constant dense<0.000000e+00> : vector<8x32xf32>
    %134 = tpu.matmul %132, %133, %cst_43 {dimension_numbers = #tpu.dot_dimension_numbers<[1], [0], [0], [1], [0, 0, 1, 1], [], []>} : vector<8x128xf32>, vector<128x32xf32>, vector<8x32xf32> -> vector<8x32xf32>
    %c0_44 = arith.constant 0 : index
    %c0_45 = arith.constant 0 : index
    %135 = vector.load %arg8[%c0_44, %c0_45] : memref<1x32xf32, #tpu.memory_space<vmem>>, vector<1x32xf32>
    %136 = vector.broadcast %135 : vector<1x32xf32> to vector<8x32xf32>
    %137 = arith.addf %134, %136 : vector<8x32xf32>
    %138 = arith.addf %90, %137 : vector<8x32xf32>
    %c0_46 = arith.constant 0 : index
    %c0_47 = arith.constant 0 : index
    %c0_48 = arith.constant 0 : index
    %139 = vector.load %arg13[%c0_46, %c0_47, %c0_48] : memref<1x8x32xf32, #tpu.memory_space<vmem>>, vector<1x8x32xf32>
    %140 = vector.shape_cast %139 : vector<1x8x32xf32> to vector<8x32xf32>
    %141 = vector.shape_cast %138 : vector<8x32xf32> to vector<1x8x32xf32>
    tpu.vector_store %arg13[%c0_46, %c0_47, %c0_48], %141 {strides = array<i32>} : memref<1x8x32xf32, #tpu.memory_space<vmem>>, vector<1x8x32xf32>,
    return
  }
  func.func @transform_0(%arg0: i32) -> (i32, i32, i32) {
    %c0_i32 = arith.constant 0 : i32
    %c0_i32_0 = arith.constant 0 : i32
    %c0_i32_1 = arith.constant 0 : i32
    return %arg0, %c0_i32, %c0_i32_0 : i32, i32, i32
  }
  func.func @transform_1(%arg0: i32) -> (i32, i32) {
    %c0_i32 = arith.constant 0 : i32
    %c0_i32_0 = arith.constant 0 : i32
    %c0_i32_1 = arith.constant 0 : i32
    return %c0_i32, %c0_i32_0 : i32, i32
  }
  func.func @transform_2(%arg0: i32) -> (i32, i32) {
    %c0_i32 = arith.constant 0 : i32
    %c0_i32_0 = arith.constant 0 : i32
    %c0_i32_1 = arith.constant 0 : i32
    return %c0_i32, %c0_i32_0 : i32, i32
  }
  func.func @transform_3(%arg0: i32) -> (i32, i32) {
    %c0_i32 = arith.constant 0 : i32
    %c0_i32_0 = arith.constant 0 : i32
    %c0_i32_1 = arith.constant 0 : i32
    return %c0_i32, %c0_i32_0 : i32, i32
  }
  func.func @transform_4(%arg0: i32) -> (i32, i32) {
    %c0_i32 = arith.constant 0 : i32
    %c0_i32_0 = arith.constant 0 : i32
    %c0_i32_1 = arith.constant 0 : i32
    return %c0_i32, %c0_i32_0 : i32, i32
  }
  func.func @transform_5(%arg0: i32) -> (i32, i32) {
    %c0_i32 = arith.constant 0 : i32
    %c0_i32_0 = arith.constant 0 : i32
    %c0_i32_1 = arith.constant 0 : i32
    return %c0_i32, %c0_i32_0 : i32, i32
  }
  func.func @transform_6(%arg0: i32) -> (i32, i32) {
    %c0_i32 = arith.constant 0 : i32
    %c0_i32_0 = arith.constant 0 : i32
    %c0_i32_1 = arith.constant 0 : i32
    return %c0_i32, %c0_i32_0 : i32, i32
  }
  func.func @transform_7(%arg0: i32) -> (i32, i32) {
    %c0_i32 = arith.constant 0 : i32
    %c0_i32_0 = arith.constant 0 : i32
    %c0_i32_1 = arith.constant 0 : i32
    return %c0_i32, %c0_i32_0 : i32, i32
  }
  func.func @transform_8(%arg0: i32) -> (i32, i32) {
    %c0_i32 = arith.constant 0 : i32
    %c0_i32_0 = arith.constant 0 : i32
    %c0_i32_1 = arith.constant 0 : i32
    return %c0_i32, %c0_i32_0 : i32, i32
  }
  func.func @transform_9(%arg0: i32) -> (i32, i32) {
    %c0_i32 = arith.constant 0 : i32
    %c0_i32_0 = arith.constant 0 : i32
    %c0_i32_1 = arith.constant 0 : i32
    return %c0_i32, %c0_i32_0 : i32, i32
  }
  func.func @transform_10(%arg0: i32) -> (i32, i32) {
    %c0_i32 = arith.constant 0 : i32
    %c0_i32_0 = arith.constant 0 : i32
    %c0_i32_1 = arith.constant 0 : i32
    return %c0_i32, %c0_i32_0 : i32, i32
  }
  func.func @transform_11(%arg0: i32) -> (i32, i32) {
    %c0_i32 = arith.constant 0 : i32
    %c0_i32_0 = arith.constant 0 : i32
    %c0_i32_1 = arith.constant 0 : i32
    return %c0_i32, %c0_i32_0 : i32, i32
  }
  func.func @transform_12(%arg0: i32) -> (i32, i32, i32) {
    %c0_i32 = arith.constant 0 : i32
    %c0_i32_0 = arith.constant 0 : i32
    %c0_i32_1 = arith.constant 0 : i32
    return %arg0, %c0_i32, %c0_i32_0 : i32, i32, i32
  }
}

</mosaic_0001>

<llo_original>
// kernel: tpu_custom_call.1
$region0: #{tpu_custom_call.1}
  #allocation0 [shape = 'u32[]', space=smem, size = 0x4, offset = 0x4, fixed_abs, tag = 'smem constant byte address 0x4 - core index']
  #allocation1 [shape = 'u32[144,128]{1,0:T(1,128)}', space=vmem, size = 0x12000, scoped, tag = 'internal scratch']
  %s0 = inlined_call_operand.vmem [shape: f32[2,8,32], index: 0, kind: input, shape index: {}]
  %s1 = inlined_call_operand.vmem [shape: f32[32,96], index: 1, kind: input, shape index: {}]
  %s2 = inlined_call_operand.vmem [shape: f32[32,32], index: 2, kind: input, shape index: {}]
  %s3 = inlined_call_operand.vmem [shape: f32[1,32], index: 3, kind: input, shape index: {}]
  %s4 = inlined_call_operand.vmem [shape: f32[32,128], index: 4, kind: input, shape index: {}]
  %s5 = inlined_call_operand.vmem [shape: f32[1,128], index: 5, kind: input, shape index: {}]
  %s6 = inlined_call_operand.vmem [shape: f32[128,32], index: 6, kind: input, shape index: {}]
  %s7 = inlined_call_operand.vmem [shape: f32[1,32], index: 7, kind: input, shape index: {}]
  %s8 = inlined_call_operand.vmem [shape: f32[1,32], index: 8, kind: input, shape index: {}]
  %s9 = inlined_call_operand.vmem [shape: f32[1,32], index: 9, kind: input, shape index: {}]
  %s10 = inlined_call_operand.vmem [shape: f32[1,32], index: 10, kind: input, shape index: {}]
  %s11 = inlined_call_operand.vmem [shape: f32[1,32], index: 11, kind: input, shape index: {}]
  %s12 = inlined_call_operand.hbm [shape: f32[2,8,32], index: 12, kind: output, shape index: {}]
  %s13 = sld [smem:[#allocation0]]
  $region81: #{tpu_custom_call.1} parent=0
    _
  %s15 = ssub.s32 1, %s13
  %s16 = scalar_select 0, %s15, %s13
  $region1: #{tpu_custom_call.1} parent=0
    #allocation2 [shape = 'u8[8192]{0}', space=vmem, size = 0x2000, scoped, tag = 'output window, operand 0']
    #allocation3 [shape = 's32[2]{0}', space=sflag, size = 0x8, scoped, tag = 'scoped memory for tpu_custom_call.1']
    %17 = vsyncpa [#allocation3], 0
    %s18 = scalar_lea.sflag [#allocation3], 1
    %19 = vsyncpa %s18, 0
    loop: start=0, step=1, limit=4
    $region2: #{tpu_custom_call.1} parent=1 // loop_pre_header
      _
    $region3: #{tpu_custom_call.1} parent=1 // loop_header
      %s21 = sphi 0, %s25
      %p22 = scmp.ge.s32.totalorder %s21, 4
      %s31 = sphi 0, %s33
      %s34 = sphi 0, %s31
      %s35 = sphi 0, %s34
      %s51 = sphi 0, %s35
      %s55 = sphi 0, %s55
      %s57 = sphi 0, %s55
      %s58 = sphi 0, %s57
      %s72 = sphi 0, %s58
      %s76 = sphi 0, %s76
      %s78 = sphi 0, %s76
      %s79 = sphi 0, %s78
      %s93 = sphi 0, %s79
      %s97 = sphi 0, %s97
      %s99 = sphi 0, %s97
      %s100 = sphi 0, %s99
      %s114 = sphi 0, %s100
      %s118 = sphi 0, %s118
      %s120 = sphi 0, %s118
      %s121 = sphi 0, %s120
      %s135 = sphi 0, %s121
      %s139 = sphi 0, %s139
      %s141 = sphi 0, %s139
      %s142 = sphi 0, %s141
      %s156 = sphi 0, %s142
      %s160 = sphi 0, %s160
      %s162 = sphi 0, %s160
      %s163 = sphi 0, %s162
      %s177 = sphi 0, %s163
      %s181 = sphi 0, %s181
      %s183 = sphi 0, %s181
      %s184 = sphi 0, %s183
      %s198 = sphi 0, %s184
      %s202 = sphi 0, %s202
      %s204 = sphi 0, %s202
      %s205 = sphi 0, %s204
      %s219 = sphi 0, %s205
      %s223 = sphi 0, %s223
      %s225 = sphi 0, %s223
      %s226 = sphi 0, %s225
      %s240 = sphi 0, %s226
      %s244 = sphi 0, %s244
      %s246 = sphi 0, %s244
      %s247 = sphi 0, %s246
      %s261 = sphi 0, %s247
      %s265 = sphi 0, %s265
      %s267 = sphi 0, %s265
      %s268 = sphi 0, %s267
      %s282 = sphi 0, %s268
      %s288 = sphi 0, %s290
      %s291 = sphi 0, %s288
      %s292 = sphi 0, %s291
      %s308 = sphi 0, %s292
    $region4: #{tpu_custom_call.1} parent=1 // loop_header_branch
      %24 = sbr.rel (%p22) target = $region8
    $region5: #{tpu_custom_call.1} parent=1 // loop_body
      %s26 = ssub.s32 %s21, 1
      %s27 = ssub.s32 %s21, 2
      %s28 = sadd.s32 %s21, 1
      %s29 = ssub.s32 %s21, %s28
      %p30 = scmp.eq.s32.totalorder %s29, 0
      %s32 = sadd.s32 %s31, 1
      %s33 = scalar_select %p30, %s31, %s32
      %p36 = pneg %p30
      %p37 = scmp.eq.s32.totalorder %s21, 1
      %p38 = por %p36, %p37
      %p39 = scmp.ne.s32.totalorder %s31, %s34
      %p40 = scmp.eq.s32.totalorder %s21, 0
      %p41 = por %p39, %p40
      %p42 = scmp.ne.s32.totalorder %s31, %s34
      %p43 = scmp.eq.s32.totalorder %s26, 1
      %p44 = por %p42, %p43
      %p45 = scmp.ne.s32.totalorder %s34, %s35
      %p46 = scmp.eq.s32.totalorder %s26, 0
      %p47 = por %p45, %p46
      %p48 = scmp.ne.s32.totalorder %s34, %s35
      %p49 = scmp.eq.s32.totalorder %s27, 1
      %p50 = por %p48, %p49
      %p52 = scmp.ne.s32.totalorder %s35, %s51
      %p53 = scmp.eq.s32.totalorder %s27, 0
      %p54 = por %p52, %p53
      %s56 = sadd.s32 %s55, 1
      %p59 = scmp.eq.s32.totalorder %s21, 1
      %p60 = scmp.ne.s32.totalorder %s55, %s57
      %p61 = scmp.eq.s32.totalorder %s21, 0
      %p62 = por %p60, %p61
      %p63 = scmp.ne.s32.totalorder %s55, %s57
      %p64 = scmp.eq.s32.totalorder %s26, 1
      %p65 = por %p63, %p64
      %p66 = scmp.ne.s32.totalorder %s57, %s58
      %p67 = scmp.eq.s32.totalorder %s26, 0
      %p68 = por %p66, %p67
      %p69 = scmp.ne.s32.totalorder %s57, %s58
      %p70 = scmp.eq.s32.totalorder %s27, 1
      %p71 = por %p69, %p70
      %p73 = scmp.ne.s32.totalorder %s58, %s72
      %p74 = scmp.eq.s32.totalorder %s27, 0
      %p75 = por %p73, %p74
      %s77 = sadd.s32 %s76, 1
      %p80 = scmp.eq.s32.totalorder %s21, 1
      %p81 = scmp.ne.s32.totalorder %s76, %s78
      %p82 = scmp.eq.s32.totalorder %s21, 0
      %p83 = por %p81, %p82
      %p84 = scmp.ne.s32.totalorder %s76, %s78
      %p85 = scmp.eq.s32.totalorder %s26, 1
      %p86 = por %p84, %p85
      %p87 = scmp.ne.s32.totalorder %s78, %s79
      %p88 = scmp.eq.s32.totalorder %s26, 0
      %p89 = por %p87, %p88
      %p90 = scmp.ne.s32.totalorder %s78, %s79
      %p91 = scmp.eq.s32.totalorder %s27, 1
      %p92 = por %p90, %p91
      %p94 = scmp.ne.s32.totalorder %s79, %s93
      %p95 = scmp.eq.s32.totalorder %s27, 0
      %p96 = por %p94, %p95
      %s98 = sadd.s32 %s97, 1
      %p101 = scmp.eq.s32.totalorder %s21, 1
      %p102 = scmp.ne.s32.totalorder %s97, %s99
      %p103 = scmp.eq.s32.totalorder %s21, 0
      %p104 = por %p102, %p103
      %p105 = scmp.ne.s32.totalorder %s97, %s99
      %p106 = scmp.eq.s32.totalorder %s26, 1
      %p107 = por %p105, %p106
      %p108 = scmp.ne.s32.totalorder %s99, %s100
      %p109 = scmp.eq.s32.totalorder %s26, 0
      %p110 = por %p108, %p109
      %p111 = scmp.ne.s32.totalorder %s99, %s100
      %p112 = scmp.eq.s32.totalorder %s27, 1
      %p113 = por %p111, %p112
      %p115 = scmp.ne.s32.totalorder %s100, %s114
      %p116 = scmp.eq.s32.totalorder %s27, 0
      %p117 = por %p115, %p116
      %s119 = sadd.s32 %s118, 1
      %p122 = scmp.eq.s32.totalorder %s21, 1
      %p123 = scmp.ne.s32.totalorder %s118, %s120
      %p124 = scmp.eq.s32.totalorder %s21, 0
      %p125 = por %p123, %p124
      %p126 = scmp.ne.s32.totalorder %s118, %s120
      %p127 = scmp.eq.s32.totalorder %s26, 1
      %p128 = por %p126, %p127
      %p129 = scmp.ne.s32.totalorder %s120, %s121
      %p130 = scmp.eq.s32.totalorder %s26, 0
      %p131 = por %p129, %p130
      %p132 = scmp.ne.s32.totalorder %s120, %s121
      %p133 = scmp.eq.s32.totalorder %s27, 1
      %p134 = por %p132, %p133
      %p136 = scmp.ne.s32.totalorder %s121, %s135
      %p137 = scmp.eq.s32.totalorder %s27, 0
      %p138 = por %p136, %p137
      %s140 = sadd.s32 %s139, 1
      %p143 = scmp.eq.s32.totalorder %s21, 1
      %p144 = scmp.ne.s32.totalorder %s139, %s141
      %p145 = scmp.eq.s32.totalorder %s21, 0
      %p146 = por %p144, %p145
      %p147 = scmp.ne.s32.totalorder %s139, %s141
      %p148 = scmp.eq.s32.totalorder %s26, 1
      %p149 = por %p147, %p148
      %p150 = scmp.ne.s32.totalorder %s141, %s142
      %p151 = scmp.eq.s32.totalorder %s26, 0
      %p152 = por %p150, %p151
      %p153 = scmp.ne.s32.totalorder %s141, %s142
      %p154 = scmp.eq.s32.totalorder %s27, 1
      %p155 = por %p153, %p154
      %p157 = scmp.ne.s32.totalorder %s142, %s156
      %p158 = scmp.eq.s32.totalorder %s27, 0
      %p159 = por %p157, %p158
      %s161 = sadd.s32 %s160, 1
      %p164 = scmp.eq.s32.totalorder %s21, 1
      %p165 = scmp.ne.s32.totalorder %s160, %s162
      %p166 = scmp.eq.s32.totalorder %s21, 0
      %p167 = por %p165, %p166
      %p168 = scmp.ne.s32.totalorder %s160, %s162
      %p169 = scmp.eq.s32.totalorder %s26, 1
      %p170 = por %p168, %p169
      %p171 = scmp.ne.s32.totalorder %s162, %s163
      %p172 = scmp.eq.s32.totalorder %s26, 0
      %p173 = por %p171, %p172
      %p174 = scmp.ne.s32.totalorder %s162, %s163
      %p175 = scmp.eq.s32.totalorder %s27, 1
      %p176 = por %p174, %p175
      %p178 = scmp.ne.s32.totalorder %s163, %s177
      %p179 = scmp.eq.s32.totalorder %s27, 0
      %p180 = por %p178, %p179
      %s182 = sadd.s32 %s181, 1
      %p185 = scmp.eq.s32.totalorder %s21, 1
      %p186 = scmp.ne.s32.totalorder %s181, %s183
      %p187 = scmp.eq.s32.totalorder %s21, 0
      %p188 = por %p186, %p187
      %p189 = scmp.ne.s32.totalorder %s181, %s183
      %p190 = scmp.eq.s32.totalorder %s26, 1
      %p191 = por %p189, %p190
      %p192 = scmp.ne.s32.totalorder %s183, %s184
      %p193 = scmp.eq.s32.totalorder %s26, 0
      %p194 = por %p192, %p193
      %p195 = scmp.ne.s32.totalorder %s183, %s184
      %p196 = scmp.eq.s32.totalorder %s27, 1
      %p197 = por %p195, %p196
      %p199 = scmp.ne.s32.totalorder %s184, %s198
      %p200 = scmp.eq.s32.totalorder %s27, 0
      %p201 = por %p199, %p200
      %s203 = sadd.s32 %s202, 1
      %p206 = scmp.eq.s32.totalorder %s21, 1
      %p207 = scmp.ne.s32.totalorder %s202, %s204
      %p208 = scmp.eq.s32.totalorder %s21, 0
      %p209 = por %p207, %p208
      %p210 = scmp.ne.s32.totalorder %s202, %s204
      %p211 = scmp.eq.s32.totalorder %s26, 1
      %p212 = por %p210, %p211
      %p213 = scmp.ne.s32.totalorder %s204, %s205
      %p214 = scmp.eq.s32.totalorder %s26, 0
      %p215 = por %p213, %p214
      %p216 = scmp.ne.s32.totalorder %s204, %s205
      %p217 = scmp.eq.s32.totalorder %s27, 1
      %p218 = por %p216, %p217
      %p220 = scmp.ne.s32.totalorder %s205, %s219
      %p221 = scmp.eq.s32.totalorder %s27, 0
      %p222 = por %p220, %p221
      %s224 = sadd.s32 %s223, 1
      %p227 = scmp.eq.s32.totalorder %s21, 1
      %p228 = scmp.ne.s32.totalorder %s223, %s225
      %p229 = scmp.eq.s32.totalorder %s21, 0
      %p230 = por %p228, %p229
      %p231 = scmp.ne.s32.totalorder %s223, %s225
      %p232 = scmp.eq.s32.totalorder %s26, 1
      %p233 = por %p231, %p232
      %p234 = scmp.ne.s32.totalorder %s225, %s226
      %p235 = scmp.eq.s32.totalorder %s26, 0
      %p236 = por %p234, %p235
      %p237 = scmp.ne.s32.totalorder %s225, %s226
      %p238 = scmp.eq.s32.totalorder %s27, 1
      %p239 = por %p237, %p238
      %p241 = scmp.ne.s32.totalorder %s226, %s240
      %p242 = scmp.eq.s32.totalorder %s27, 0
      %p243 = por %p241, %p242
      %s245 = sadd.s32 %s244, 1
      %p248 = scmp.eq.s32.totalorder %s21, 1
      %p249 = scmp.ne.s32.totalorder %s244, %s246
      %p250 = scmp.eq.s32.totalorder %s21, 0
      %p251 = por %p249, %p250
      %p252 = scmp.ne.s32.totalorder %s244, %s246
      %p253 = scmp.eq.s32.totalorder %s26, 1
      %p254 = por %p252, %p253
      %p255 = scmp.ne.s32.totalorder %s246, %s247
      %p256 = scmp.eq.s32.totalorder %s26, 0
      %p257 = por %p255, %p256
      %p258 = scmp.ne.s32.totalorder %s246, %s247
      %p259 = scmp.eq.s32.totalorder %s27, 1
      %p260 = por %p258, %p259
      %p262 = scmp.ne.s32.totalorder %s247, %s261
      %p263 = scmp.eq.s32.totalorder %s27, 0
      %p264 = por %p262, %p263
      %s266 = sadd.s32 %s265, 1
      %p269 = scmp.eq.s32.totalorder %s21, 1
      %p270 = scmp.ne.s32.totalorder %s265, %s267
      %p271 = scmp.eq.s32.totalorder %s21, 0
      %p272 = por %p270, %p271
      %p273 = scmp.ne.s32.totalorder %s265, %s267
      %p274 = scmp.eq.s32.totalorder %s26, 1
      %p275 = por %p273, %p274
      %p276 = scmp.ne.s32.totalorder %s267, %s268
      %p277 = scmp.eq.s32.totalorder %s26, 0
      %p278 = por %p276, %p277
      %p279 = scmp.ne.s32.totalorder %s267, %s268
      %p280 = scmp.eq.s32.totalorder %s27, 1
      %p281 = por %p279, %p280
      %p283 = scmp.ne.s32.totalorder %s268, %s282
      %p284 = scmp.eq.s32.totalorder %s27, 0
      %p285 = por %p283, %p284
      %s286 = ssub.s32 %s21, %s28
      %p287 = scmp.eq.s32.totalorder %s286, 0
      %s289 = sadd.s32 %s288, 1
      %s290 = scalar_select %p287, %s288, %s289
      %p293 = pneg %p287
      %p294 = scmp.eq.s32.totalorder %s21, 1
      %p295 = por %p293, %p294
      %p296 = scmp.ne.s32.totalorder %s288, %s291
      %p297 = scmp.eq.s32.totalorder %s21, 0
      %p298 = por %p296, %p297
      %p299 = scmp.ne.s32.totalorder %s288, %s291
      %p300 = scmp.eq.s32.totalorder %s26, 1
      %p301 = por %p299, %p300
      %p302 = scmp.ne.s32.totalorder %s291, %s292
      %p303 = scmp.eq.s32.totalorder %s26, 0
      %p304 = por %p302, %p303
      %p305 = scmp.ne.s32.totalorder %s291, %s292
      %p306 = scmp.eq.s32.totalorder %s27, 1
      %p307 = por %p305, %p306
      %p309 = scmp.ne.s32.totalorder %s292, %s308
      %p310 = scmp.eq.s32.totalorder %s27, 0
      %p311 = por %p309, %p310
      %p312 = scmp.le.s32.totalorder 1, %s21
      %p313 = scmp.lt.s32.totalorder %s21, 3
      %p314 = pnand %p312, %p313
      %p315 = pneg %p314
      // Predicated region
      $region9: #{tpu_custom_call.1} parent=5 // pred_check
        _
      $region10: #{tpu_custom_call.1} parent=5 // pred_check_branch
        %317 = sbr.rel (%p314) target = $region12
      $region11: #{tpu_custom_call.1} parent=5 // pred_region
        %s318 = ssub.s32 %s21, 1
        // Predicated region
        $region13: #{tpu_custom_call.1} parent=11 // pred_check
          %p319 = pneg %p68
        $region14: #{tpu_custom_call.1} parent=11 // pred_check_branch
          %321 = sbr.rel (%p319) target = $region16
        $region15: #{tpu_custom_call.1} parent=11 // pred_region
          _
        $region16: #{tpu_custom_call.1} parent=11 // pred_fallthru
          _
        // Predicated region
        $region17: #{tpu_custom_call.1} parent=11 // pred_check
          %p322 = pneg %p89
        $region18: #{tpu_custom_call.1} parent=11 // pred_check_branch
          %324 = sbr.rel (%p322) target = $region20
        $region19: #{tpu_custom_call.1} parent=11 // pred_region
          _
        $region20: #{tpu_custom_call.1} parent=11 // pred_fallthru
          _
        // Predicated region
        $region21: #{tpu_custom_call.1} parent=11 // pred_check
          %p325 = pneg %p110
        $region22: #{tpu_custom_call.1} parent=11 // pred_check_branch
          %327 = sbr.rel (%p325) target = $region24
        $region23: #{tpu_custom_call.1} parent=11 // pred_region
          _
        $region24: #{tpu_custom_call.1} parent=11 // pred_fallthru
          _
        // Predicated region
        $region25: #{tpu_custom_call.1} parent=11 // pred_check
          %p328 = pneg %p131
        $region26: #{tpu_custom_call.1} parent=11 // pred_check_branch
          %330 = sbr.rel (%p328) target = $region28
        $region27: #{tpu_custom_call.1} parent=11 // pred_region
          _
        $region28: #{tpu_custom_call.1} parent=11 // pred_fallthru
          _
        // Predicated region
        $region29: #{tpu_custom_call.1} parent=11 // pred_check
          %p331 = pneg %p152
        $region30: #{tpu_custom_call.1} parent=11 // pred_check_branch
          %333 = sbr.rel (%p331) target = $region32
        $region31: #{tpu_custom_call.1} parent=11 // pred_region
          _
        $region32: #{tpu_custom_call.1} parent=11 // pred_fallthru
          _
        // Predicated region
        $region33: #{tpu_custom_call.1} parent=11 // pred_check
          %p334 = pneg %p173
        $region34: #{tpu_custom_call.1} parent=11 // pred_check_branch
          %336 = sbr.rel (%p334) target = $region36
        $region35: #{tpu_custom_call.1} parent=11 // pred_region
          _
        $region36: #{tpu_custom_call.1} parent=11 // pred_fallthru
          _
        // Predicated region
        $region37: #{tpu_custom_call.1} parent=11 // pred_check
          %p337 = pneg %p194
        $region38: #{tpu_custom_call.1} parent=11 // pred_check_branch
          %339 = sbr.rel (%p337) target = $region40
        $region39: #{tpu_custom_call.1} parent=11 // pred_region
          _
        $region40: #{tpu_custom_call.1} parent=11 // pred_fallthru
          _
        // Predicated region
        $region41: #{tpu_custom_call.1} parent=11 // pred_check
          %p340 = pneg %p215
        $region42: #{tpu_custom_call.1} parent=11 // pred_check_branch
          %342 = sbr.rel (%p340) target = $region44
        $region43: #{tpu_custom_call.1} parent=11 // pred_region
          _
        $region44: #{tpu_custom_call.1} parent=11 // pred_fallthru
          _
        // Predicated region
        $region45: #{tpu_custom_call.1} parent=11 // pred_check
          %p343 = pneg %p236
        $region46: #{tpu_custom_call.1} parent=11 // pred_check_branch
          %345 = sbr.rel (%p343) target = $region48
        $region47: #{tpu_custom_call.1} parent=11 // pred_region
          _
        $region48: #{tpu_custom_call.1} parent=11 // pred_fallthru
          _
        // Predicated region
        $region49: #{tpu_custom_call.1} parent=11 // pred_check
          %p346 = pneg %p257
        $region50: #{tpu_custom_call.1} parent=11 // pred_check_branch
          %348 = sbr.rel (%p346) target = $region52
        $region51: #{tpu_custom_call.1} parent=11 // pred_region
          _
        $region52: #{tpu_custom_call.1} parent=11 // pred_fallthru
          _
        // Predicated region
        $region53: #{tpu_custom_call.1} parent=11 // pred_check
          %p349 = pneg %p278
        $region54: #{tpu_custom_call.1} parent=11 // pred_check_branch
          %351 = sbr.rel (%p349) target = $region56
        $region55: #{tpu_custom_call.1} parent=11 // pred_region
          _
        $region56: #{tpu_custom_call.1} parent=11 // pred_fallthru
          _
      $region12: #{tpu_custom_call.1} parent=5 // pred_fallthru
        _
      %p352 = scmp.lt.s32.totalorder %s21, 2
      // Predicated region
      $region57: #{tpu_custom_call.1} parent=5 // pred_check
        %p353 = pneg %p352
      $region58: #{tpu_custom_call.1} parent=5 // pred_check_branch
        %355 = sbr.rel (%p353) target = $region60
      $region59: #{tpu_custom_call.1} parent=5 // pred_region
        // Predicated region
        $region61: #{tpu_custom_call.1} parent=59 // pred_check
          %p356 = pneg %p41
        $region62: #{tpu_custom_call.1} parent=59 // pred_check_branch
          %358 = sbr.rel (%p356) target = $region64
        $region63: #{tpu_custom_call.1} parent=59 // pred_region
          %p359 = scmp.lt.s32.totalorder %s21, 1
          %s360 = scalar_select %p359, %s21, 1
          %s361 = smul.addr %s360, 8
          %s362 = scalar_lea.vmem %s0, %s361
        $region64: #{tpu_custom_call.1} parent=59 // pred_fallthru
          _
      $region60: #{tpu_custom_call.1} parent=5 // pred_fallthru
        _
      %p363 = scmp.le.s32.totalorder 1, %s21
      %p364 = scmp.lt.s32.totalorder %s21, 3
      %p365 = pnand %p363, %p364
      %p366 = pneg %p365
      // Predicated region
      $region65: #{tpu_custom_call.1} parent=5 // pred_check
        _
      $region66: #{tpu_custom_call.1} parent=5 // pred_check_branch
        %368 = sbr.rel (%p365) target = $region68
      $region67: #{tpu_custom_call.1} parent=5 // pred_region
        %s369 = ssub.s32 %s21, 1
        %p370 = scmp.lt.s32.totalorder %s26, 1
        %s371 = scalar_select %p370, %s26, 1
        %s372 = smul.addr %s371, 8
        %s373 = scalar_lea.vmem %s0, %s372
        %p374 = pneg %p47
        %p375 = pneg %p44
        %p376 = pneg %p68
        %p377 = pneg %p65
        %p378 = pneg %p89
        %p379 = pneg %p86
        %p380 = pneg %p110
        %p381 = pneg %p107
        %p382 = pneg %p131
        %p383 = pneg %p128
        %p384 = pneg %p152
        %p385 = pneg %p149
        %p386 = pneg %p173
        %p387 = pneg %p170
        %p388 = pneg %p194
        %p389 = pneg %p191
        %p390 = pneg %p215
        %p391 = pneg %p212
        %p392 = pneg %p236
        %p393 = pneg %p233
        %p394 = pneg %p257
        %p395 = pneg %p254
        %p396 = pneg %p278
        %p397 = pneg %p275
        %p398 = pneg %p304
        %p399 = pneg %p301
        %s400 = sand.u32 %s291, 1
        %s401 = scalar_lea.sflag [#allocation3], %s400
        %s402 = sand.u32 %s291, 1
        %s403 = smul.addr %s402, 8
        %s404 = scalar_lea.vmem [#allocation2], %s403
        %p405 = scmp.lt.s32.totalorder %s26, 1
        %s406 = scalar_select %p405, %s26, 1
        %s407 = smul.addr %s406, 8
        %s408 = scalar_lea.vmem %s0, %s407
        %v409 = vld [vmem:[%s408] sm:$0xff]
        %v410 = vld [vmem:[%s8] sm:$0x1]
        %v411 = vld [vmem:[%s9] sm:$0x1]
        %vm412 = vcmask 261120
        %v413 = vsel %vm412, %v409, 0.0
        %414 = vadd.xlane.f32.xlu0 %v413
        %v415 = vpop.xlane.xlu0 %414
        %v416 = vrcp.pop 32.0
        %v417 = vmul.f32 %v415, %v416
        %v418 = vsub.f32 %v409, %v417
        %v419 = vmul.f32 %v418, %v418
        %v420 = vsel %vm412, %v419, 0.0
        %421 = vadd.xlane.f32.xlu0 %v420
        %v422 = vpop.xlane.xlu0 %421
        %v423 = vmul.f32 %v422, %v416
        %v424 = vadd.f32 %v423, 1e-05
        %v425 = vrsqrt.pop %v424
        %v426 = vmul.f32 %v418, %v425
        %v428 = vlaneseq
        %v429 = vshrl.u32 %v428, 7
        %v430 = vsub.s32 0, %v429
        %v431 = vrot.slane %v410, %v430
        %v433 = vmul.f32 %v426, %v431
        %v435 = vlaneseq
        %v436 = vshrl.u32 %v435, 7
        %v437 = vsub.s32 0, %v436
        %v438 = vrot.slane %v411, %v437
        %v440 = vadd.f32 %v433, %v438
        %v441 = vld [vmem:[%s1] sm:$0xff]
        %v442 = vld [vmem:[%s1 + $0x8] sm:$0xff]
        %v443 = vld [vmem:[%s1 + $0x10] sm:$0xff]
        %v444 = vld [vmem:[%s1 + $0x18] sm:$0xff]
        %v446 = vsel %vm412, %v440, 0
        %448 = vmatprep.subr.mxu0 0.0
        %449 = vmatpush1.msra.mxu0 %v441
        %450 = vmatprep.subr.mxu0 0.0
        %451 = vmatpush1.msra.mxu0 %v442
        %452 = vmatprep.subr.mxu0 0.0
        %453 = vmatpush1.msra.mxu0 %v443
        %454 = vmatprep.subr.mxu0 0.0
        %455 = vmatpush1.msra.mxu0 %v444
        %456 = vmatprep.subr.mxu0 0.0
        %457 = vmatpush1.msra.mxu0 0.0
        %458 = vmatprep.subr.mxu0 0.0
        %459 = vmatpush1.msra.mxu0 0.0
        %460 = vmatprep.subr.mxu0 0.0
        %461 = vmatpush1.msra.mxu0 0.0
        %462 = vmatprep.subr.mxu0 0.0
        %463 = vmatpush1.msra.mxu0 0.0
        %464 = vmatprep.subr.mxu0 0.0
        %465 = vmatpush1.msra.mxu0 0.0
        %466 = vmatprep.subr.mxu0 0.0
        %467 = vmatpush1.msra.mxu0 0.0
        %468 = vmatprep.subr.mxu0 0.0
        %469 = vmatpush1.msra.mxu0 0.0
        %470 = vmatprep.subr.mxu0 0.0
        %471 = vmatpush1.msra.mxu0 0.0
        %472 = vmatprep.subr.mxu0 0.0
        %473 = vmatpush1.msra.mxu0 0.0
        %474 = vmatprep.subr.mxu0 0.0
        %475 = vmatpush1.msra.mxu0 0.0
        %476 = vmatprep.subr.mxu0 0.0
        %477 = vmatpush1.msra.mxu0 0.0
        %478 = vmatprep.subr.mxu0 0.0
        %479 = vmatpush1.msra.mxu0 0.0
        %480 = vmatprep.subr.mxu0 0.0
        %481 = vmatpush1.msra.mxu0 0.0
        %482 = vmatprep.subr.mxu0 0.0
        %483 = vmatpush1.msra.mxu0 0.0
        %484 = vmatprep.subr.mxu0 0.0
        %485 = vmatpush1.msra.mxu0 0.0
        %486 = vmatprep.subr.mxu0 0.0
        %487 = vmatpush1.msra.mxu0 0.0
        %488 = vmatprep.subr.mxu0 0.0
        %489 = vmatpush1.msra.mxu0 0.0
        %490 = vmatprep.subr.mxu0 0.0
        %491 = vmatpush1.msra.mxu0 0.0
        %492 = vmatprep.subr.mxu0 0.0
        %493 = vmatpush1.msra.mxu0 0.0
        %494 = vmatprep.subr.mxu0 0.0
        %495 = vmatpush1.msra.mxu0 0.0
        %496 = vmatprep.subr.mxu0 0.0
        %497 = vmatpush1.msra.mxu0 0.0
        %498 = vmatprep.subr.mxu0 0.0
        %499 = vmatpush1.msra.mxu0 0.0
        %500 = vmatprep.subr.mxu0 0.0
        %501 = vmatpush1.msra.mxu0 0.0
        %502 = vmatprep.subr.mxu0 0.0
        %503 = vmatpush1.msra.mxu0 0.0
        %504 = vmatprep.subr.mxu0 0.0
        %505 = vmatpush1.msra.mxu0 0.0
        %506 = vmatprep.subr.mxu0 0.0
        %507 = vmatpush1.msra.mxu0 0.0
        %508 = vmatprep.subr.mxu0 0.0
        %509 = vmatpush1.msra.mxu0 0.0
        %510 = vmatprep.subr.mxu0 0.0
        %511 = vmatpush1.msra.mxu0 0.0
        %512 = vmatprep.mubr.f32.mxu0 0.0
        %513 = vmatmul.mubr.f32.gmra.mrb[0].mxu0 %v446
        %v514 = vpop.f32.mrb[0].mxu0
        %v515 = vadd.f32 0.0, %v514
        %v516 = vpop.f32.mrb[0].mxu0
        %517 = vdwg.mxu0
        %519 = vrot.lane.b32.xlu0 %v515, 120
        %v520 = vpop.permute.xlu0 %519
        %521 = vrot.lane.b32.xlu0 %v515, 112
        %v522 = vpop.permute.xlu0 %521
        %523 = vrot.lane.b32.xlu0 %v515, 104
        %v524 = vpop.permute.xlu0 %523
        %525 = vrot.lane.b32.xlu0 %v515, 96
        %v526 = vpop.permute.xlu0 %525
        %527 = vrot.lane.b32.xlu0 %v515, 88
        %v528 = vpop.permute.xlu0 %527
        %529 = vrot.lane.b32.xlu0 %v515, 80
        %v530 = vpop.permute.xlu0 %529
        %531 = vrot.lane.b32.xlu0 %v515, 72
        %v532 = vpop.permute.xlu0 %531
        %533 = vrot.lane.b32.xlu0 %v515, 64
        %v534 = vpop.permute.xlu0 %533
        %536 = vrot.lane.b32.xlu0 %v515, 56
        %v537 = vpop.permute.xlu0 %536
        %539 = vrot.lane.b32.xlu0 %v515, 48
        %v540 = vpop.permute.xlu0 %539
        %542 = vrot.lane.b32.xlu0 %v515, 40
        %v543 = vpop.permute.xlu0 %542
        %vm545 = vcmask 64512
        %v546 = vsel %vm545, %v515, 0
        %v548 = vsel %vm545, %v526, 0
        %550 = vmatprep.subr.mxu0 0.0
        %551 = vmatpush1.xpose.msra.mxu0 %v548
        %552 = vmatprep.subr.mxu0 0.0
        %553 = vmatpush1.xpose.msra.mxu0 0.0
        %554 = vmatprep.subr.mxu0 0.0
        %555 = vmatpush1.xpose.msra.mxu0 0.0
        %556 = vmatprep.subr.mxu0 0.0
        %557 = vmatpush1.xpose.msra.mxu0 0.0
        %558 = vmatprep.subr.mxu0 0.0
        %559 = vmatpush1.xpose.msra.mxu0 0.0
        %560 = vmatprep.subr.mxu0 0.0
        %561 = vmatpush1.xpose.msra.mxu0 0.0
        %562 = vmatprep.subr.mxu0 0.0
        %563 = vmatpush1.xpose.msra.mxu0 0.0
        %564 = vmatprep.subr.mxu0 0.0
        %565 = vmatpush1.xpose.msra.mxu0 0.0
        %566 = vmatprep.subr.mxu0 0.0
        %567 = vmatpush1.xpose.msra.mxu0 0.0
        %568 = vmatprep.subr.mxu0 0.0
        %569 = vmatpush1.xpose.msra.mxu0 0.0
        %570 = vmatprep.subr.mxu0 0.0
        %571 = vmatpush1.xpose.msra.mxu0 0.0
        %572 = vmatprep.subr.mxu0 0.0
        %573 = vmatpush1.xpose.msra.mxu0 0.0
        %574 = vmatprep.subr.mxu0 0.0
        %575 = vmatpush1.xpose.msra.mxu0 0.0
        %576 = vmatprep.subr.mxu0 0.0
        %577 = vmatpush1.xpose.msra.mxu0 0.0
        %578 = vmatprep.subr.mxu0 0.0
        %579 = vmatpush1.xpose.msra.mxu0 0.0
        %580 = vmatprep.subr.mxu0 0.0
        %581 = vmatpush1.xpose.msra.mxu0 0.0
        %582 = vmatprep.subr.mxu0 0.0
        %583 = vmatpush1.xpose.msra.mxu0 0.0
        %584 = vmatprep.subr.mxu0 0.0
        %585 = vmatpush1.xpose.msra.mxu0 0.0
        %586 = vmatprep.subr.mxu0 0.0
        %587 = vmatpush1.xpose.msra.mxu0 0.0
        %588 = vmatprep.subr.mxu0 0.0
        %589 = vmatpush1.xpose.msra.mxu0 0.0
        %590 = vmatprep.subr.mxu0 0.0
        %591 = vmatpush1.xpose.msra.mxu0 0.0
        %592 = vmatprep.subr.mxu0 0.0
        %593 = vmatpush1.xpose.msra.mxu0 0.0
        %594 = vmatprep.subr.mxu0 0.0
        %595 = vmatpush1.xpose.msra.mxu0 0.0
        %596 = vmatprep.subr.mxu0 0.0
        %597 = vmatpush1.xpose.msra.mxu0 0.0
        %598 = vmatprep.subr.mxu0 0.0
        %599 = vmatpush1.xpose.msra.mxu0 0.0
        %600 = vmatprep.subr.mxu0 0.0
        %601 = vmatpush1.xpose.msra.mxu0 0.0
        %602 = vmatprep.subr.mxu0 0.0
        %603 = vmatpush1.xpose.msra.mxu0 0.0
        %604 = vmatprep.subr.mxu0 0.0
        %605 = vmatpush1.xpose.msra.mxu0 0.0
        %606 = vmatprep.subr.mxu0 0.0
        %607 = vmatpush1.xpose.msra.mxu0 0.0
        %608 = vmatprep.subr.mxu0 0.0
        %609 = vmatpush1.xpose.msra.mxu0 0.0
        %610 = vmatprep.subr.mxu0 0.0
        %611 = vmatpush1.xpose.msra.mxu0 0.0
        %612 = vmatprep.subr.mxu0 0.0
        %613 = vmatpush1.xpose.msra.mxu0 0.0
        %614 = vmatprep.mubr.f32.mxu0 0.0
        %615 = vmatmul.mubr.f32.gmra.mrb[0].mxu0 %v546
        %v616 = vpop.f32.mrb[0].mxu0
        %v617 = vadd.f32 0.0, %v616
        %v618 = vpop.f32.mrb[0].mxu0
        %619 = vdwg.mxu0
        %v620 = vsel %vm545, %v520, 0
        %v622 = vsel %vm545, %v528, 0
        %624 = vmatprep.subr.mxu0 0.0
        %625 = vmatpush1.xpose.msra.mxu0 %v622
        %626 = vmatprep.subr.mxu0 0.0
        %627 = vmatpush1.xpose.msra.mxu0 0.0
        %628 = vmatprep.subr.mxu0 0.0
        %629 = vmatpush1.xpose.msra.mxu0 0.0
        %630 = vmatprep.subr.mxu0 0.0
        %631 = vmatpush1.xpose.msra.mxu0 0.0
        %632 = vmatprep.subr.mxu0 0.0
        %633 = vmatpush1.xpose.msra.mxu0 0.0
        %634 = vmatprep.subr.mxu0 0.0
        %635 = vmatpush1.xpose.msra.mxu0 0.0
        %636 = vmatprep.subr.mxu0 0.0
        %637 = vmatpush1.xpose.msra.mxu0 0.0
        %638 = vmatprep.subr.mxu0 0.0
        %639 = vmatpush1.xpose.msra.mxu0 0.0
        %640 = vmatprep.subr.mxu0 0.0
        %641 = vmatpush1.xpose.msra.mxu0 0.0
        %642 = vmatprep.subr.mxu0 0.0
        %643 = vmatpush1.xpose.msra.mxu0 0.0
        %644 = vmatprep.subr.mxu0 0.0
        %645 = vmatpush1.xpose.msra.mxu0 0.0
        %646 = vmatprep.subr.mxu0 0.0
        %647 = vmatpush1.xpose.msra.mxu0 0.0
        %648 = vmatprep.subr.mxu0 0.0
        %649 = vmatpush1.xpose.msra.mxu0 0.0
        %650 = vmatprep.subr.mxu0 0.0
        %651 = vmatpush1.xpose.msra.mxu0 0.0
        %652 = vmatprep.subr.mxu0 0.0
        %653 = vmatpush1.xpose.msra.mxu0 0.0
        %654 = vmatprep.subr.mxu0 0.0
        %655 = vmatpush1.xpose.msra.mxu0 0.0
        %656 = vmatprep.subr.mxu0 0.0
        %657 = vmatpush1.xpose.msra.mxu0 0.0
        %658 = vmatprep.subr.mxu0 0.0
        %659 = vmatpush1.xpose.msra.mxu0 0.0
        %660 = vmatprep.subr.mxu0 0.0
        %661 = vmatpush1.xpose.msra.mxu0 0.0
        %662 = vmatprep.subr.mxu0 0.0
        %663 = vmatpush1.xpose.msra.mxu0 0.0
        %664 = vmatprep.subr.mxu0 0.0
        %665 = vmatpush1.xpose.msra.mxu0 0.0
        %666 = vmatprep.subr.mxu0 0.0
        %667 = vmatpush1.xpose.msra.mxu0 0.0
        %668 = vmatprep.subr.mxu0 0.0
        %669 = vmatpush1.xpose.msra.mxu0 0.0
        %670 = vmatprep.subr.mxu0 0.0
        %671 = vmatpush1.xpose.msra.mxu0 0.0
        %672 = vmatprep.subr.mxu0 0.0
        %673 = vmatpush1.xpose.msra.mxu0 0.0
        %674 = vmatprep.subr.mxu0 0.0
        %675 = vmatpush1.xpose.msra.mxu0 0.0
        %676 = vmatprep.subr.mxu0 0.0
        %677 = vmatpush1.xpose.msra.mxu0 0.0
        %678 = vmatprep.subr.mxu0 0.0
        %679 = vmatpush1.xpose.msra.mxu0 0.0
        %680 = vmatprep.subr.mxu0 0.0
        %681 = vmatpush1.xpose.msra.mxu0 0.0
        %682 = vmatprep.subr.mxu0 0.0
        %683 = vmatpush1.xpose.msra.mxu0 0.0
        %684 = vmatprep.subr.mxu0 0.0
        %685 = vmatpush1.xpose.msra.mxu0 0.0
        %686 = vmatprep.subr.mxu0 0.0
        %687 = vmatpush1.xpose.msra.mxu0 0.0
        %688 = vmatprep.mubr.f32.mxu0 0.0
        %689 = vmatmul.mubr.f32.gmra.mrb[0].mxu0 %v620
        %v690 = vpop.f32.mrb[0].mxu0
        %v691 = vadd.f32 0.0, %v690
        %v692 = vpop.f32.mrb[0].mxu0
        %693 = vdwg.mxu0
        %v694 = vsel %vm545, %v522, 0
        %v696 = vsel %vm545, %v530, 0
        %698 = vmatprep.subr.mxu0 0.0
        %699 = vmatpush1.xpose.msra.mxu0 %v696
        %700 = vmatprep.subr.mxu0 0.0
        %701 = vmatpush1.xpose.msra.mxu0 0.0
        %702 = vmatprep.subr.mxu0 0.0
        %703 = vmatpush1.xpose.msra.mxu0 0.0
        %704 = vmatprep.subr.mxu0 0.0
        %705 = vmatpush1.xpose.msra.mxu0 0.0
        %706 = vmatprep.subr.mxu0 0.0
        %707 = vmatpush1.xpose.msra.mxu0 0.0
        %708 = vmatprep.subr.mxu0 0.0
        %709 = vmatpush1.xpose.msra.mxu0 0.0
        %710 = vmatprep.subr.mxu0 0.0
        %711 = vmatpush1.xpose.msra.mxu0 0.0
        %712 = vmatprep.subr.mxu0 0.0
        %713 = vmatpush1.xpose.msra.mxu0 0.0
        %714 = vmatprep.subr.mxu0 0.0
        %715 = vmatpush1.xpose.msra.mxu0 0.0
        %716 = vmatprep.subr.mxu0 0.0
        %717 = vmatpush1.xpose.msra.mxu0 0.0
        %718 = vmatprep.subr.mxu0 0.0
        %719 = vmatpush1.xpose.msra.mxu0 0.0
        %720 = vmatprep.subr.mxu0 0.0
        %721 = vmatpush1.xpose.msra.mxu0 0.0
        %722 = vmatprep.subr.mxu0 0.0
        %723 = vmatpush1.xpose.msra.mxu0 0.0
        %724 = vmatprep.subr.mxu0 0.0
        %725 = vmatpush1.xpose.msra.mxu0 0.0
        %726 = vmatprep.subr.mxu0 0.0
        %727 = vmatpush1.xpose.msra.mxu0 0.0
        %728 = vmatprep.subr.mxu0 0.0
        %729 = vmatpush1.xpose.msra.mxu0 0.0
        %730 = vmatprep.subr.mxu0 0.0
        %731 = vmatpush1.xpose.msra.mxu0 0.0
        %732 = vmatprep.subr.mxu0 0.0
        %733 = vmatpush1.xpose.msra.mxu0 0.0
        %734 = vmatprep.subr.mxu0 0.0
        %735 = vmatpush1.xpose.msra.mxu0 0.0
        %736 = vmatprep.subr.mxu0 0.0
        %737 = vmatpush1.xpose.msra.mxu0 0.0
        %738 = vmatprep.subr.mxu0 0.0
        %739 = vmatpush1.xpose.msra.mxu0 0.0
        %740 = vmatprep.subr.mxu0 0.0
        %741 = vmatpush1.xpose.msra.mxu0 0.0
        %742 = vmatprep.subr.mxu0 0.0
        %743 = vmatpush1.xpose.msra.mxu0 0.0
        %744 = vmatprep.subr.mxu0 0.0
        %745 = vmatpush1.xpose.msra.mxu0 0.0
        %746 = vmatprep.subr.mxu0 0.0
        %747 = vmatpush1.xpose.msra.mxu0 0.0
        %748 = vmatprep.subr.mxu0 0.0
        %749 = vmatpush1.xpose.msra.mxu0 0.0
        %750 = vmatprep.subr.mxu0 0.0
        %751 = vmatpush1.xpose.msra.mxu0 0.0
        %752 = vmatprep.subr.mxu0 0.0
        %753 = vmatpush1.xpose.msra.mxu0 0.0
        %754 = vmatprep.subr.mxu0 0.0
        %755 = vmatpush1.xpose.msra.mxu0 0.0
        %756 = vmatprep.subr.mxu0 0.0
        %757 = vmatpush1.xpose.msra.mxu0 0.0
        %758 = vmatprep.subr.mxu0 0.0
        %759 = vmatpush1.xpose.msra.mxu0 0.0
        %760 = vmatprep.subr.mxu0 0.0
        %761 = vmatpush1.xpose.msra.mxu0 0.0
        %762 = vmatprep.mubr.f32.mxu0 0.0
        %763 = vmatmul.mubr.f32.gmra.mrb[0].mxu0 %v694
        %v764 = vpop.f32.mrb[0].mxu0
        %v765 = vadd.f32 0.0, %v764
        %v766 = vpop.f32.mrb[0].mxu0
        %767 = vdwg.mxu0
        %v768 = vsel %vm545, %v524, 0
        %v770 = vsel %vm545, %v532, 0
        %772 = vmatprep.subr.mxu0 0.0
        %773 = vmatpush1.xpose.msra.mxu0 %v770
        %774 = vmatprep.subr.mxu0 0.0
        %775 = vmatpush1.xpose.msra.mxu0 0.0
        %776 = vmatprep.subr.mxu0 0.0
        %777 = vmatpush1.xpose.msra.mxu0 0.0
        %778 = vmatprep.subr.mxu0 0.0
        %779 = vmatpush1.xpose.msra.mxu0 0.0
        %780 = vmatprep.subr.mxu0 0.0
        %781 = vmatpush1.xpose.msra.mxu0 0.0
        %782 = vmatprep.subr.mxu0 0.0
        %783 = vmatpush1.xpose.msra.mxu0 0.0
        %784 = vmatprep.subr.mxu0 0.0
        %785 = vmatpush1.xpose.msra.mxu0 0.0
        %786 = vmatprep.subr.mxu0 0.0
        %787 = vmatpush1.xpose.msra.mxu0 0.0
        %788 = vmatprep.subr.mxu0 0.0
        %789 = vmatpush1.xpose.msra.mxu0 0.0
        %790 = vmatprep.subr.mxu0 0.0
        %791 = vmatpush1.xpose.msra.mxu0 0.0
        %792 = vmatprep.subr.mxu0 0.0
        %793 = vmatpush1.xpose.msra.mxu0 0.0
        %794 = vmatprep.subr.mxu0 0.0
        %795 = vmatpush1.xpose.msra.mxu0 0.0
        %796 = vmatprep.subr.mxu0 0.0
        %797 = vmatpush1.xpose.msra.mxu0 0.0
        %798 = vmatprep.subr.mxu0 0.0
        %799 = vmatpush1.xpose.msra.mxu0 0.0
        %800 = vmatprep.subr.mxu0 0.0
        %801 = vmatpush1.xpose.msra.mxu0 0.0
        %802 = vmatprep.subr.mxu0 0.0
        %803 = vmatpush1.xpose.msra.mxu0 0.0
        %804 = vmatprep.subr.mxu0 0.0
        %805 = vmatpush1.xpose.msra.mxu0 0.0
        %806 = vmatprep.subr.mxu0 0.0
        %807 = vmatpush1.xpose.msra.mxu0 0.0
        %808 = vmatprep.subr.mxu0 0.0
        %809 = vmatpush1.xpose.msra.mxu0 0.0
        %810 = vmatprep.subr.mxu0 0.0
        %811 = vmatpush1.xpose.msra.mxu0 0.0
        %812 = vmatprep.subr.mxu0 0.0
        %813 = vmatpush1.xpose.msra.mxu0 0.0
        %814 = vmatprep.subr.mxu0 0.0
        %815 = vmatpush1.xpose.msra.mxu0 0.0
        %816 = vmatprep.subr.mxu0 0.0
        %817 = vmatpush1.xpose.msra.mxu0 0.0
        %818 = vmatprep.subr.mxu0 0.0
        %819 = vmatpush1.xpose.msra.mxu0 0.0
        %820 = vmatprep.subr.mxu0 0.0
        %821 = vmatpush1.xpose.msra.mxu0 0.0
        %822 = vmatprep.subr.mxu0 0.0
        %823 = vmatpush1.xpose.msra.mxu0 0.0
        %824 = vmatprep.subr.mxu0 0.0
        %825 = vmatpush1.xpose.msra.mxu0 0.0
        %826 = vmatprep.subr.mxu0 0.0
        %827 = vmatpush1.xpose.msra.mxu0 0.0
        %828 = vmatprep.subr.mxu0 0.0
        %829 = vmatpush1.xpose.msra.mxu0 0.0
        %830 = vmatprep.subr.mxu0 0.0
        %831 = vmatpush1.xpose.msra.mxu0 0.0
        %832 = vmatprep.subr.mxu0 0.0
        %833 = vmatpush1.xpose.msra.mxu0 0.0
        %834 = vmatprep.subr.mxu0 0.0
        %835 = vmatpush1.xpose.msra.mxu0 0.0
        %836 = vmatprep.mubr.f32.mxu0 0.0
        %837 = vmatmul.mubr.f32.gmra.mrb[0].mxu0 %v768
        %v838 = vpop.f32.mrb[0].mxu0
        %v839 = vadd.f32 0.0, %v838
        %v840 = vpop.f32.mrb[0].mxu0
        %841 = vdwg.mxu0
        %v842 = vlaneseq
        %v843 = vshrl.u32 %v842, 7
        %v844 = vlaneseq
        %v845 = vand.u32 %v844, 127
        %vm846 = vcmp.gt.s32.totalorder %v845, %v843
        %v847 = vsel %vm846, 1, 0
        %vm848 = vcmp.eq.s32.totalorder %v847, 1
        %v849 = vsel %vm848, -1e+30, %v617
        %v850 = vsel %vm848, -1e+30, %v691
        %v851 = vsel %vm848, -1e+30, %v765
        %v852 = vsel %vm848, -1e+30, %v839
        %v853 = vsel %vm545, %v849, -inf
        %854 = vmax.xlane.f32.xlu0 %v853
        %v855 = vpop.xlane.xlu0 %854
        %v856 = vsel %vm545, %v850, -inf
        %857 = vmax.xlane.f32.xlu0 %v856
        %v858 = vpop.xlane.xlu0 %857
        %v859 = vsel %vm545, %v851, -inf
        %860 = vmax.xlane.f32.xlu0 %v859
        %v861 = vpop.xlane.xlu0 %860
        %v862 = vsel %vm545, %v852, -inf
        %863 = vmax.xlane.f32.xlu0 %v862
        %v864 = vpop.xlane.xlu0 %863
        %v865 = vsub.f32 %v849, %v855
        %v866 = vsub.f32 %v850, %v858
        %v867 = vsub.f32 %v851, %v861
        %v868 = vsub.f32 %v852, %v864
        %v869 = vmul.f32 %v865, 1.442695
        %v870 = vpow.pop %v869
        %v871 = vmul.f32 %v866, 1.442695
        %v872 = vpow.pop %v871
        %v873 = vmul.f32 %v867, 1.442695
        %v874 = vpow.pop %v873
        %v875 = vmul.f32 %v868, 1.442695
        %v876 = vpow.pop %v875
        %v877 = vsel %vm545, %v870, 0.0
        %878 = vadd.xlane.f32.xlu0 %v877
        %v879 = vpop.xlane.xlu0 %878
        %v880 = vsel %vm545, %v872, 0.0
        %881 = vadd.xlane.f32.xlu0 %v880
        %v882 = vpop.xlane.xlu0 %881
        %v883 = vsel %vm545, %v874, 0.0
        %884 = vadd.xlane.f32.xlu0 %v883
        %v885 = vpop.xlane.xlu0 %884
        %v886 = vsel %vm545, %v876, 0.0
        %887 = vadd.xlane.f32.xlu0 %v886
        %v888 = vpop.xlane.xlu0 %887
        %v890 = vsel %vm545, %v870, 0
        %892 = vmatprep.subr.mxu0 0.0
        %893 = vmatpush1.msra.mxu0 %v534
        %894 = vmatprep.subr.mxu0 0.0
        %895 = vmatpush1.msra.mxu0 0.0
        %896 = vmatprep.subr.mxu0 0.0
        %897 = vmatpush1.msra.mxu0 0.0
        %898 = vmatprep.subr.mxu0 0.0
        %899 = vmatpush1.msra.mxu0 0.0
        %900 = vmatprep.subr.mxu0 0.0
        %901 = vmatpush1.msra.mxu0 0.0
        %902 = vmatprep.subr.mxu0 0.0
        %903 = vmatpush1.msra.mxu0 0.0
        %904 = vmatprep.subr.mxu0 0.0
        %905 = vmatpush1.msra.mxu0 0.0
        %906 = vmatprep.subr.mxu0 0.0
        %907 = vmatpush1.msra.mxu0 0.0
        %908 = vmatprep.subr.mxu0 0.0
        %909 = vmatpush1.msra.mxu0 0.0
        %910 = vmatprep.subr.mxu0 0.0
        %911 = vmatpush1.msra.mxu0 0.0
        %912 = vmatprep.subr.mxu0 0.0
        %913 = vmatpush1.msra.mxu0 0.0
        %914 = vmatprep.subr.mxu0 0.0
        %915 = vmatpush1.msra.mxu0 0.0
        %916 = vmatprep.subr.mxu0 0.0
        %917 = vmatpush1.msra.mxu0 0.0
        %918 = vmatprep.subr.mxu0 0.0
        %919 = vmatpush1.msra.mxu0 0.0
        %920 = vmatprep.subr.mxu0 0.0
        %921 = vmatpush1.msra.mxu0 0.0
        %922 = vmatprep.subr.mxu0 0.0
        %923 = vmatpush1.msra.mxu0 0.0
        %924 = vmatprep.subr.mxu0 0.0
        %925 = vmatpush1.msra.mxu0 0.0
        %926 = vmatprep.subr.mxu0 0.0
        %927 = vmatpush1.msra.mxu0 0.0
        %928 = vmatprep.subr.mxu0 0.0
        %929 = vmatpush1.msra.mxu0 0.0
        %930 = vmatprep.subr.mxu0 0.0
        %931 = vmatpush1.msra.mxu0 0.0
        %932 = vmatprep.subr.mxu0 0.0
        %933 = vmatpush1.msra.mxu0 0.0
        %934 = vmatprep.subr.mxu0 0.0
        %935 = vmatpush1.msra.mxu0 0.0
        %936 = vmatprep.subr.mxu0 0.0
        %937 = vmatpush1.msra.mxu0 0.0
        %938 = vmatprep.subr.mxu0 0.0
        %939 = vmatpush1.msra.mxu0 0.0
        %940 = vmatprep.subr.mxu0 0.0
        %941 = vmatpush1.msra.mxu0 0.0
        %942 = vmatprep.subr.mxu0 0.0
        %943 = vmatpush1.msra.mxu0 0.0
        %944 = vmatprep.subr.mxu0 0.0
        %945 = vmatpush1.msra.mxu0 0.0
        %946 = vmatprep.subr.mxu0 0.0
        %947 = vmatpush1.msra.mxu0 0.0
        %948 = vmatprep.subr.mxu0 0.0
        %949 = vmatpush1.msra.mxu0 0.0
        %950 = vmatprep.subr.mxu0 0.0
        %951 = vmatpush1.msra.mxu0 0.0
        %952 = vmatprep.subr.mxu0 0.0
        %953 = vmatpush1.msra.mxu0 0.0
        %954 = vmatprep.subr.mxu0 0.0
        %955 = vmatpush1.msra.mxu0 0.0
        %956 = vmatprep.mubr.f32.mxu0 0.0
        %957 = vmatmul.mubr.f32.gmra.mrb[0].mxu0 %v890
        %v958 = vpop.f32.mrb[0].mxu0
        %v959 = vadd.f32 0.0, %v958
        %v960 = vpop.f32.mrb[0].mxu0
        %961 = vdwg.mxu0
        %v963 = vsel %vm545, %v872, 0
        %965 = vmatprep.subr.mxu0 0.0
        %966 = vmatpush1.msra.mxu0 %v537
        %967 = vmatprep.subr.mxu0 0.0
        %968 = vmatpush1.msra.mxu0 0.0
        %969 = vmatprep.subr.mxu0 0.0
        %970 = vmatpush1.msra.mxu0 0.0
        %971 = vmatprep.subr.mxu0 0.0
        %972 = vmatpush1.msra.mxu0 0.0
        %973 = vmatprep.subr.mxu0 0.0
        %974 = vmatpush1.msra.mxu0 0.0
        %975 = vmatprep.subr.mxu0 0.0
        %976 = vmatpush1.msra.mxu0 0.0
        %977 = vmatprep.subr.mxu0 0.0
        %978 = vmatpush1.msra.mxu0 0.0
        %979 = vmatprep.subr.mxu0 0.0
        %980 = vmatpush1.msra.mxu0 0.0
        %981 = vmatprep.subr.mxu0 0.0
        %982 = vmatpush1.msra.mxu0 0.0
        %983 = vmatprep.subr.mxu0 0.0
        %984 = vmatpush1.msra.mxu0 0.0
        %985 = vmatprep.subr.mxu0 0.0
        %986 = vmatpush1.msra.mxu0 0.0
        %987 = vmatprep.subr.mxu0 0.0
        %988 = vmatpush1.msra.mxu0 0.0
        %989 = vmatprep.subr.mxu0 0.0
        %990 = vmatpush1.msra.mxu0 0.0
        %991 = vmatprep.subr.mxu0 0.0
        %992 = vmatpush1.msra.mxu0 0.0
        %993 = vmatprep.subr.mxu0 0.0
        %994 = vmatpush1.msra.mxu0 0.0
        %995 = vmatprep.subr.mxu0 0.0
        %996 = vmatpush1.msra.mxu0 0.0
        %997 = vmatprep.subr.mxu0 0.0
        %998 = vmatpush1.msra.mxu0 0.0
        %999 = vmatprep.subr.mxu0 0.0
        %1000 = vmatpush1.msra.mxu0 0.0
        %1001 = vmatprep.subr.mxu0 0.0
        %1002 = vmatpush1.msra.mxu0 0.0
        %1003 = vmatprep.subr.mxu0 0.0
        %1004 = vmatpush1.msra.mxu0 0.0
        %1005 = vmatprep.subr.mxu0 0.0
        %1006 = vmatpush1.msra.mxu0 0.0
        %1007 = vmatprep.subr.mxu0 0.0
        %1008 = vmatpush1.msra.mxu0 0.0
        %1009 = vmatprep.subr.mxu0 0.0
        %1010 = vmatpush1.msra.mxu0 0.0
        %1011 = vmatprep.subr.mxu0 0.0
        %1012 = vmatpush1.msra.mxu0 0.0
        %1013 = vmatprep.subr.mxu0 0.0
        %1014 = vmatpush1.msra.mxu0 0.0
        %1015 = vmatprep.subr.mxu0 0.0
        %1016 = vmatpush1.msra.mxu0 0.0
        %1017 = vmatprep.subr.mxu0 0.0
        %1018 = vmatpush1.msra.mxu0 0.0
        %1019 = vmatprep.subr.mxu0 0.0
        %1020 = vmatpush1.msra.mxu0 0.0
        %1021 = vmatprep.subr.mxu0 0.0
        %1022 = vmatpush1.msra.mxu0 0.0
        %1023 = vmatprep.subr.mxu0 0.0
        %1024 = vmatpush1.msra.mxu0 0.0
        %1025 = vmatprep.subr.mxu0 0.0
        %1026 = vmatpush1.msra.mxu0 0.0
        %1027 = vmatprep.subr.mxu0 0.0
        %1028 = vmatpush1.msra.mxu0 0.0
        %1029 = vmatprep.mubr.f32.mxu0 0.0
        %1030 = vmatmul.mubr.f32.gmra.mrb[0].mxu0 %v963
        %v1031 = vpop.f32.mrb[0].mxu0
        %v1032 = vadd.f32 0.0, %v1031
        %v1033 = vpop.f32.mrb[0].mxu0
        %1034 = vdwg.mxu0
        %v1036 = vsel %vm545, %v874, 0
        %1038 = vmatprep.subr.mxu0 0.0
        %1039 = vmatpush1.msra.mxu0 %v540
        %1040 = vmatprep.subr.mxu0 0.0
        %1041 = vmatpush1.msra.mxu0 0.0
        %1042 = vmatprep.subr.mxu0 0.0
        %1043 = vmatpush1.msra.mxu0 0.0
        %1044 = vmatprep.subr.mxu0 0.0
        %1045 = vmatpush1.msra.mxu0 0.0
        %1046 = vmatprep.subr.mxu0 0.0
        %1047 = vmatpush1.msra.mxu0 0.0
        %1048 = vmatprep.subr.mxu0 0.0
        %1049 = vmatpush1.msra.mxu0 0.0
        %1050 = vmatprep.subr.mxu0 0.0
        %1051 = vmatpush1.msra.mxu0 0.0
        %1052 = vmatprep.subr.mxu0 0.0
        %1053 = vmatpush1.msra.mxu0 0.0
        %1054 = vmatprep.subr.mxu0 0.0
        %1055 = vmatpush1.msra.mxu0 0.0
        %1056 = vmatprep.subr.mxu0 0.0
        %1057 = vmatpush1.msra.mxu0 0.0
        %1058 = vmatprep.subr.mxu0 0.0
        %1059 = vmatpush1.msra.mxu0 0.0
        %1060 = vmatprep.subr.mxu0 0.0
        %1061 = vmatpush1.msra.mxu0 0.0
        %1062 = vmatprep.subr.mxu0 0.0
        %1063 = vmatpush1.msra.mxu0 0.0
        %1064 = vmatprep.subr.mxu0 0.0
        %1065 = vmatpush1.msra.mxu0 0.0
        %1066 = vmatprep.subr.mxu0 0.0
        %1067 = vmatpush1.msra.mxu0 0.0
        %1068 = vmatprep.subr.mxu0 0.0
        %1069 = vmatpush1.msra.mxu0 0.0
        %1070 = vmatprep.subr.mxu0 0.0
        %1071 = vmatpush1.msra.mxu0 0.0
        %1072 = vmatprep.subr.mxu0 0.0
        %1073 = vmatpush1.msra.mxu0 0.0
        %1074 = vmatprep.subr.mxu0 0.0
        %1075 = vmatpush1.msra.mxu0 0.0
        %1076 = vmatprep.subr.mxu0 0.0
        %1077 = vmatpush1.msra.mxu0 0.0
        %1078 = vmatprep.subr.mxu0 0.0
        %1079 = vmatpush1.msra.mxu0 0.0
        %1080 = vmatprep.subr.mxu0 0.0
        %1081 = vmatpush1.msra.mxu0 0.0
        %1082 = vmatprep.subr.mxu0 0.0
        %1083 = vmatpush1.msra.mxu0 0.0
        %1084 = vmatprep.subr.mxu0 0.0
        %1085 = vmatpush1.msra.mxu0 0.0
        %1086 = vmatprep.subr.mxu0 0.0
        %1087 = vmatpush1.msra.mxu0 0.0
        %1088 = vmatprep.subr.mxu0 0.0
        %1089 = vmatpush1.msra.mxu0 0.0
        %1090 = vmatprep.subr.mxu0 0.0
        %1091 = vmatpush1.msra.mxu0 0.0
        %1092 = vmatprep.subr.mxu0 0.0
        %1093 = vmatpush1.msra.mxu0 0.0
        %1094 = vmatprep.subr.mxu0 0.0
        %1095 = vmatpush1.msra.mxu0 0.0
        %1096 = vmatprep.subr.mxu0 0.0
        %1097 = vmatpush1.msra.mxu0 0.0
        %1098 = vmatprep.subr.mxu0 0.0
        %1099 = vmatpush1.msra.mxu0 0.0
        %1100 = vmatprep.subr.mxu0 0.0
        %1101 = vmatpush1.msra.mxu0 0.0
        %1102 = vmatprep.mubr.f32.mxu0 0.0
        %1103 = vmatmul.mubr.f32.gmra.mrb[0].mxu0 %v1036
        %v1104 = vpop.f32.mrb[0].mxu0
        %v1105 = vadd.f32 0.0, %v1104
        %v1106 = vpop.f32.mrb[0].mxu0
        %1107 = vdwg.mxu0
        %v1109 = vsel %vm545, %v876, 0
        %1111 = vmatprep.subr.mxu0 0.0
        %1112 = vmatpush1.msra.mxu0 %v543
        %1113 = vmatprep.subr.mxu0 0.0
        %1114 = vmatpush1.msra.mxu0 0.0
        %1115 = vmatprep.subr.mxu0 0.0
        %1116 = vmatpush1.msra.mxu0 0.0
        %1117 = vmatprep.subr.mxu0 0.0
        %1118 = vmatpush1.msra.mxu0 0.0
        %1119 = vmatprep.subr.mxu0 0.0
        %1120 = vmatpush1.msra.mxu0 0.0
        %1121 = vmatprep.subr.mxu0 0.0
        %1122 = vmatpush1.msra.mxu0 0.0
        %1123 = vmatprep.subr.mxu0 0.0
        %1124 = vmatpush1.msra.mxu0 0.0
        %1125 = vmatprep.subr.mxu0 0.0
        %1126 = vmatpush1.msra.mxu0 0.0
        %1127 = vmatprep.subr.mxu0 0.0
        %1128 = vmatpush1.msra.mxu0 0.0
        %1129 = vmatprep.subr.mxu0 0.0
        %1130 = vmatpush1.msra.mxu0 0.0
        %1131 = vmatprep.subr.mxu0 0.0
        %1132 = vmatpush1.msra.mxu0 0.0
        %1133 = vmatprep.subr.mxu0 0.0
        %1134 = vmatpush1.msra.mxu0 0.0
        %1135 = vmatprep.subr.mxu0 0.0
        %1136 = vmatpush1.msra.mxu0 0.0
        %1137 = vmatprep.subr.mxu0 0.0
        %1138 = vmatpush1.msra.mxu0 0.0
        %1139 = vmatprep.subr.mxu0 0.0
        %1140 = vmatpush1.msra.mxu0 0.0
        %1141 = vmatprep.subr.mxu0 0.0
        %1142 = vmatpush1.msra.mxu0 0.0
        %1143 = vmatprep.subr.mxu0 0.0
        %1144 = vmatpush1.msra.mxu0 0.0
        %1145 = vmatprep.subr.mxu0 0.0
        %1146 = vmatpush1.msra.mxu0 0.0
        %1147 = vmatprep.subr.mxu0 0.0
        %1148 = vmatpush1.msra.mxu0 0.0
        %1149 = vmatprep.subr.mxu0 0.0
        %1150 = vmatpush1.msra.mxu0 0.0
        %1151 = vmatprep.subr.mxu0 0.0
        %1152 = vmatpush1.msra.mxu0 0.0
        %1153 = vmatprep.subr.mxu0 0.0
        %1154 = vmatpush1.msra.mxu0 0.0
        %1155 = vmatprep.subr.mxu0 0.0
        %1156 = vmatpush1.msra.mxu0 0.0
        %1157 = vmatprep.subr.mxu0 0.0
        %1158 = vmatpush1.msra.mxu0 0.0
        %1159 = vmatprep.subr.mxu0 0.0
        %1160 = vmatpush1.msra.mxu0 0.0
        %1161 = vmatprep.subr.mxu0 0.0
        %1162 = vmatpush1.msra.mxu0 0.0
        %1163 = vmatprep.subr.mxu0 0.0
        %1164 = vmatpush1.msra.mxu0 0.0
        %1165 = vmatprep.subr.mxu0 0.0
        %1166 = vmatpush1.msra.mxu0 0.0
        %1167 = vmatprep.subr.mxu0 0.0
        %1168 = vmatpush1.msra.mxu0 0.0
        %1169 = vmatprep.subr.mxu0 0.0
        %1170 = vmatpush1.msra.mxu0 0.0
        %1171 = vmatprep.subr.mxu0 0.0
        %1172 = vmatpush1.msra.mxu0 0.0
        %1173 = vmatprep.subr.mxu0 0.0
        %1174 = vmatpush1.msra.mxu0 0.0
        %1175 = vmatprep.mubr.f32.mxu0 0.0
        %1176 = vmatmul.mubr.f32.gmra.mrb[0].mxu0 %v1109
        %v1177 = vpop.f32.mrb[0].mxu0
        %v1178 = vadd.f32 0.0, %v1177
        %v1179 = vpop.f32.mrb[0].mxu0
        %1180 = vdwg.mxu0
        %v1181 = vrcp.pop %v879
        %v1182 = vrcp.pop %v882
        %v1183 = vrcp.pop %v885
        %v1184 = vrcp.pop %v888
        %v1185 = vmul.f32 %v959, %v1181
        %v1186 = vmul.f32 %v1032, %v1182
        %v1187 = vmul.f32 %v1105, %v1183
        %v1188 = vmul.f32 %v1178, %v1184
        %1190 = vrot.lane.b32.xlu0 %v1186, 8
        %v1191 = vpop.permute.xlu0 %1190
        %1194 = vrot.lane.b32.xlu0 %v1187, 16
        %v1195 = vpop.permute.xlu0 %1194
        %1198 = vrot.lane.b32.xlu0 %v1188, 24
        %v1199 = vpop.permute.xlu0 %1198
        %v1201 = vsel %vm545, %v1185, %v1191
        %vm1202 = vcmask 130048
        %v1203 = vsel %vm1202, %v1201, %v1195
        %vm1204 = vcmask 195584
        %v1205 = vsel %vm1204, %v1203, %v1199
        %v1206 = vld [vmem:[%s2] sm:$0xff]
        %v1207 = vld [vmem:[%s2 + $0x8] sm:$0xff]
        %v1208 = vld [vmem:[%s2 + $0x10] sm:$0xff]
        %v1209 = vld [vmem:[%s2 + $0x18] sm:$0xff]
        %v1210 = vld [vmem:[%s3] sm:$0x1]
        %v1212 = vlaneseq
        %v1213 = vshrl.u32 %v1212, 7
        %v1214 = vsub.s32 0, %v1213
        %v1215 = vrot.slane %v1210, %v1214
        %v1218 = vsel %vm412, %v1205, 0
        %1220 = vmatprep.subr.mxu0 0.0
        %1221 = vmatpush1.msra.mxu0 %v1206
        %1222 = vmatprep.subr.mxu0 0.0
        %1223 = vmatpush1.msra.mxu0 %v1207
        %1224 = vmatprep.subr.mxu0 0.0
        %1225 = vmatpush1.msra.mxu0 %v1208
        %1226 = vmatprep.subr.mxu0 0.0
        %1227 = vmatpush1.msra.mxu0 %v1209
        %1228 = vmatprep.subr.mxu0 0.0
        %1229 = vmatpush1.msra.mxu0 0.0
        %1230 = vmatprep.subr.mxu0 0.0
        %1231 = vmatpush1.msra.mxu0 0.0
        %1232 = vmatprep.subr.mxu0 0.0
        %1233 = vmatpush1.msra.mxu0 0.0
        %1234 = vmatprep.subr.mxu0 0.0
        %1235 = vmatpush1.msra.mxu0 0.0
        %1236 = vmatprep.subr.mxu0 0.0
        %1237 = vmatpush1.msra.mxu0 0.0
        %1238 = vmatprep.subr.mxu0 0.0
        %1239 = vmatpush1.msra.mxu0 0.0
        %1240 = vmatprep.subr.mxu0 0.0
        %1241 = vmatpush1.msra.mxu0 0.0
        %1242 = vmatprep.subr.mxu0 0.0
        %1243 = vmatpush1.msra.mxu0 0.0
        %1244 = vmatprep.subr.mxu0 0.0
        %1245 = vmatpush1.msra.mxu0 0.0
        %1246 = vmatprep.subr.mxu0 0.0
        %1247 = vmatpush1.msra.mxu0 0.0
        %1248 = vmatprep.subr.mxu0 0.0
        %1249 = vmatpush1.msra.mxu0 0.0
        %1250 = vmatprep.subr.mxu0 0.0
        %1251 = vmatpush1.msra.mxu0 0.0
        %1252 = vmatprep.subr.mxu0 0.0
        %1253 = vmatpush1.msra.mxu0 0.0
        %1254 = vmatprep.subr.mxu0 0.0
        %1255 = vmatpush1.msra.mxu0 0.0
        %1256 = vmatprep.subr.mxu0 0.0
        %1257 = vmatpush1.msra.mxu0 0.0
        %1258 = vmatprep.subr.mxu0 0.0
        %1259 = vmatpush1.msra.mxu0 0.0
        %1260 = vmatprep.subr.mxu0 0.0
        %1261 = vmatpush1.msra.mxu0 0.0
        %1262 = vmatprep.subr.mxu0 0.0
        %1263 = vmatpush1.msra.mxu0 0.0
        %1264 = vmatprep.subr.mxu0 0.0
        %1265 = vmatpush1.msra.mxu0 0.0
        %1266 = vmatprep.subr.mxu0 0.0
        %1267 = vmatpush1.msra.mxu0 0.0
        %1268 = vmatprep.subr.mxu0 0.0
        %1269 = vmatpush1.msra.mxu0 0.0
        %1270 = vmatprep.subr.mxu0 0.0
        %1271 = vmatpush1.msra.mxu0 0.0
        %1272 = vmatprep.subr.mxu0 0.0
        %1273 = vmatpush1.msra.mxu0 0.0
        %1274 = vmatprep.subr.mxu0 0.0
        %1275 = vmatpush1.msra.mxu0 0.0
        %1276 = vmatprep.subr.mxu0 0.0
        %1277 = vmatpush1.msra.mxu0 0.0
        %1278 = vmatprep.subr.mxu0 0.0
        %1279 = vmatpush1.msra.mxu0 0.0
        %1280 = vmatprep.subr.mxu0 0.0
        %1281 = vmatpush1.msra.mxu0 0.0
        %1282 = vmatprep.subr.mxu0 0.0
        %1283 = vmatpush1.msra.mxu0 0.0
        %1284 = vmatprep.mubr.f32.mxu0 0.0
        %1285 = vmatmul.mubr.f32.gmra.mrb[0].mxu0 %v1218
        %v1286 = vpop.f32.mrb[0].mxu0
        %v1287 = vadd.f32 %v1215, %v1286
        %v1288 = vpop.f32.mrb[0].mxu0
        %1289 = vdwg.mxu0
        %v1290 = vadd.f32 %v409, %v1287
        %v1291 = vld [vmem:[%s10] sm:$0x1]
        %v1292 = vld [vmem:[%s11] sm:$0x1]
        %v1293 = vsel %vm412, %v1290, 0.0
        %1294 = vadd.xlane.f32.xlu0 %v1293
        %v1295 = vpop.xlane.xlu0 %1294
        %v1296 = vmul.f32 %v1295, %v416
        %v1297 = vsub.f32 %v1290, %v1296
        %v1298 = vmul.f32 %v1297, %v1297
        %v1299 = vsel %vm412, %v1298, 0.0
        %1300 = vadd.xlane.f32.xlu0 %v1299
        %v1301 = vpop.xlane.xlu0 %1300
        %v1302 = vmul.f32 %v1301, %v416
        %v1303 = vadd.f32 %v1302, 1e-05
        %v1304 = vrsqrt.pop %v1303
        %v1305 = vmul.f32 %v1297, %v1304
        %v1307 = vlaneseq
        %v1308 = vshrl.u32 %v1307, 7
        %v1309 = vsub.s32 0, %v1308
        %v1310 = vrot.slane %v1291, %v1309
        %v1312 = vmul.f32 %v1305, %v1310
        %v1314 = vlaneseq
        %v1315 = vshrl.u32 %v1314, 7
        %v1316 = vsub.s32 0, %v1315
        %v1317 = vrot.slane %v1292, %v1316
        %v1319 = vadd.f32 %v1312, %v1317
        %v1320 = vld [vmem:[%s4] sm:$0xff]
        %v1321 = vld [vmem:[%s4 + $0x8] sm:$0xff]
        %v1322 = vld [vmem:[%s4 + $0x10] sm:$0xff]
        %v1323 = vld [vmem:[%s4 + $0x18] sm:$0xff]
        %v1324 = vld [vmem:[%s5] sm:$0x1]
        %v1326 = vlaneseq
        %v1327 = vshrl.u32 %v1326, 7
        %v1328 = vsub.s32 0, %v1327
        %v1329 = vrot.slane %v1324, %v1328
        %v1332 = vsel %vm412, %v1319, 0
        %1334 = vmatprep.subr.mxu0 0.0
        %1335 = vmatpush1.msra.mxu0 %v1320
        %1336 = vmatprep.subr.mxu0 0.0
        %1337 = vmatpush1.msra.mxu0 %v1321
        %1338 = vmatprep.subr.mxu0 0.0
        %1339 = vmatpush1.msra.mxu0 %v1322
        %1340 = vmatprep.subr.mxu0 0.0
        %1341 = vmatpush1.msra.mxu0 %v1323
        %1342 = vmatprep.subr.mxu0 0.0
        %1343 = vmatpush1.msra.mxu0 0.0
        %1344 = vmatprep.subr.mxu0 0.0
        %1345 = vmatpush1.msra.mxu0 0.0
        %1346 = vmatprep.subr.mxu0 0.0
        %1347 = vmatpush1.msra.mxu0 0.0
        %1348 = vmatprep.subr.mxu0 0.0
        %1349 = vmatpush1.msra.mxu0 0.0
        %1350 = vmatprep.subr.mxu0 0.0
        %1351 = vmatpush1.msra.mxu0 0.0
        %1352 = vmatprep.subr.mxu0 0.0
        %1353 = vmatpush1.msra.mxu0 0.0
        %1354 = vmatprep.subr.mxu0 0.0
        %1355 = vmatpush1.msra.mxu0 0.0
        %1356 = vmatprep.subr.mxu0 0.0
        %1357 = vmatpush1.msra.mxu0 0.0
        %1358 = vmatprep.subr.mxu0 0.0
        %1359 = vmatpush1.msra.mxu0 0.0
        %1360 = vmatprep.subr.mxu0 0.0
        %1361 = vmatpush1.msra.mxu0 0.0
        %1362 = vmatprep.subr.mxu0 0.0
        %1363 = vmatpush1.msra.mxu0 0.0
        %1364 = vmatprep.subr.mxu0 0.0
        %1365 = vmatpush1.msra.mxu0 0.0
        %1366 = vmatprep.subr.mxu0 0.0
        %1367 = vmatpush1.msra.mxu0 0.0
        %1368 = vmatprep.subr.mxu0 0.0
        %1369 = vmatpush1.msra.mxu0 0.0
        %1370 = vmatprep.subr.mxu0 0.0
        %1371 = vmatpush1.msra.mxu0 0.0
        %1372 = vmatprep.subr.mxu0 0.0
        %1373 = vmatpush1.msra.mxu0 0.0
        %1374 = vmatprep.subr.mxu0 0.0
        %1375 = vmatpush1.msra.mxu0 0.0
        %1376 = vmatprep.subr.mxu0 0.0
        %1377 = vmatpush1.msra.mxu0 0.0
        %1378 = vmatprep.subr.mxu0 0.0
        %1379 = vmatpush1.msra.mxu0 0.0
        %1380 = vmatprep.subr.mxu0 0.0
        %1381 = vmatpush1.msra.mxu0 0.0
        %1382 = vmatprep.subr.mxu0 0.0
        %1383 = vmatpush1.msra.mxu0 0.0
        %1384 = vmatprep.subr.mxu0 0.0
        %1385 = vmatpush1.msra.mxu0 0.0
        %1386 = vmatprep.subr.mxu0 0.0
        %1387 = vmatpush1.msra.mxu0 0.0
        %1388 = vmatprep.subr.mxu0 0.0
        %1389 = vmatpush1.msra.mxu0 0.0
        %1390 = vmatprep.subr.mxu0 0.0
        %1391 = vmatpush1.msra.mxu0 0.0
        %1392 = vmatprep.subr.mxu0 0.0
        %1393 = vmatpush1.msra.mxu0 0.0
        %1394 = vmatprep.subr.mxu0 0.0
        %1395 = vmatpush1.msra.mxu0 0.0
        %1396 = vmatprep.subr.mxu0 0.0
        %1397 = vmatpush1.msra.mxu0 0.0
        %1398 = vmatprep.mubr.f32.mxu0 0.0
        %1399 = vmatmul.mubr.f32.gmra.mrb[0].mxu0 %v1332
        %v1400 = vpop.f32.mrb[0].mxu0
        %v1401 = vadd.f32 %v1329, %v1400
        %v1402 = vpop.f32.mrb[0].mxu0
        %1403 = vdwg.mxu0
        %v1404 = vmul.f32 %v1401, 0.5
        %v1405 = vmul.f32 %v1401, 0.044715
        %v1406 = vmul.f32 %v1405, %v1401
        %v1407 = vmul.f32 %v1406, %v1401
        %v1408 = vadd.f32 %v1401, %v1407
        %v1409 = vmul.f32 %v1408, 0.7978846
        %v1410 = vtanh.pop %v1409
        %v1411 = vadd.f32 %v1410, 1.0
        %v1412 = vmul.f32 %v1404, %v1411
        %v1413 = vld [vmem:[%s6] sm:$0xff]
        %v1414 = vld [vmem:[%s6 + $0x8] sm:$0xff]
        %v1415 = vld [vmem:[%s6 + $0x10] sm:$0xff]
        %v1416 = vld [vmem:[%s6 + $0x18] sm:$0xff]
        %v1417 = vld [vmem:[%s6 + $0x20] sm:$0xff]
        %v1418 = vld [vmem:[%s6 + $0x28] sm:$0xff]
        %v1419 = vld [vmem:[%s6 + $0x30] sm:$0xff]
        %v1420 = vld [vmem:[%s6 + $0x38] sm:$0xff]
        %v1421 = vld [vmem:[%s6 + $0x40] sm:$0xff]
        %v1422 = vld [vmem:[%s6 + $0x48] sm:$0xff]
        %v1423 = vld [vmem:[%s6 + $0x50] sm:$0xff]
        %v1424 = vld [vmem:[%s6 + $0x58] sm:$0xff]
        %v1425 = vld [vmem:[%s6 + $0x60] sm:$0xff]
        %v1426 = vld [vmem:[%s6 + $0x68] sm:$0xff]
        %v1427 = vld [vmem:[%s6 + $0x70] sm:$0xff]
        %v1428 = vld [vmem:[%s6 + $0x78] sm:$0xff]
        %v1429 = vld [vmem:[%s7] sm:$0x1]
        %v1431 = vlaneseq
        %v1432 = vshrl.u32 %v1431, 7
        %v1433 = vsub.s32 0, %v1432
        %v1434 = vrot.slane %v1429, %v1433
        %1436 = vmatprep.subr.mxu0 0.0
        %1437 = vmatpush1.msra.mxu0 %v1413
        %1438 = vmatprep.subr.mxu0 0.0
        %1439 = vmatpush1.msra.mxu0 %v1414
        %1440 = vmatprep.subr.mxu0 0.0
        %1441 = vmatpush1.msra.mxu0 %v1415
        %1442 = vmatprep.subr.mxu0 0.0
        %1443 = vmatpush1.msra.mxu0 %v1416
        %1444 = vmatprep.subr.mxu0 0.0
        %1445 = vmatpush1.msra.mxu0 %v1417
        %1446 = vmatprep.subr.mxu0 0.0
        %1447 = vmatpush1.msra.mxu0 %v1418
        %1448 = vmatprep.subr.mxu0 0.0
        %1449 = vmatpush1.msra.mxu0 %v1419
        %1450 = vmatprep.subr.mxu0 0.0
        %1451 = vmatpush1.msra.mxu0 %v1420
        %1452 = vmatprep.subr.mxu0 0.0
        %1453 = vmatpush1.msra.mxu0 %v1421
        %1454 = vmatprep.subr.mxu0 0.0
        %1455 = vmatpush1.msra.mxu0 %v1422
        %1456 = vmatprep.subr.mxu0 0.0
        %1457 = vmatpush1.msra.mxu0 %v1423
        %1458 = vmatprep.subr.mxu0 0.0
        %1459 = vmatpush1.msra.mxu0 %v1424
        %1460 = vmatprep.subr.mxu0 0.0
        %1461 = vmatpush1.msra.mxu0 %v1425
        %1462 = vmatprep.subr.mxu0 0.0
        %1463 = vmatpush1.msra.mxu0 %v1426
        %1464 = vmatprep.subr.mxu0 0.0
        %1465 = vmatpush1.msra.mxu0 %v1427
        %1466 = vmatprep.subr.mxu0 0.0
        %1467 = vmatpush1.msra.mxu0 %v1428
        %1468 = vmatprep.subr.mxu0 0.0
        %1469 = vmatpush1.msra.mxu0 0.0
        %1470 = vmatprep.subr.mxu0 0.0
        %1471 = vmatpush1.msra.mxu0 0.0
        %1472 = vmatprep.subr.mxu0 0.0
        %1473 = vmatpush1.msra.mxu0 0.0
        %1474 = vmatprep.subr.mxu0 0.0
        %1475 = vmatpush1.msra.mxu0 0.0
        %1476 = vmatprep.subr.mxu0 0.0
        %1477 = vmatpush1.msra.mxu0 0.0
        %1478 = vmatprep.subr.mxu0 0.0
        %1479 = vmatpush1.msra.mxu0 0.0
        %1480 = vmatprep.subr.mxu0 0.0
        %1481 = vmatpush1.msra.mxu0 0.0
        %1482 = vmatprep.subr.mxu0 0.0
        %1483 = vmatpush1.msra.mxu0 0.0
        %1484 = vmatprep.subr.mxu0 0.0
        %1485 = vmatpush1.msra.mxu0 0.0
        %1486 = vmatprep.subr.mxu0 0.0
        %1487 = vmatpush1.msra.mxu0 0.0
        %1488 = vmatprep.subr.mxu0 0.0
        %1489 = vmatpush1.msra.mxu0 0.0
        %1490 = vmatprep.subr.mxu0 0.0
        %1491 = vmatpush1.msra.mxu0 0.0
        %1492 = vmatprep.subr.mxu0 0.0
        %1493 = vmatpush1.msra.mxu0 0.0
        %1494 = vmatprep.subr.mxu0 0.0
        %1495 = vmatpush1.msra.mxu0 0.0
        %1496 = vmatprep.subr.mxu0 0.0
        %1497 = vmatpush1.msra.mxu0 0.0
        %1498 = vmatprep.subr.mxu0 0.0
        %1499 = vmatpush1.msra.mxu0 0.0
        %1500 = vmatprep.mubr.f32.mxu0 0.0
        %1501 = vmatmul.mubr.f32.gmra.mrb[0].mxu0 %v1412
        %v1502 = vpop.f32.mrb[0].mxu0
        %v1503 = vadd.f32 %v1434, %v1502
        %v1504 = vpop.f32.mrb[0].mxu0
        %1505 = vdwg.mxu0
        %v1506 = vadd.f32 %v1290, %v1503
        %1507 = vst.msk [vmem:[%s404] sm:$0xff] %vm412, %v1506
        %s1508 = sand.u32 %s291, 1
        %s1509 = scalar_lea.sflag [#allocation3], %s1508
        %s1510 = sand.u32 %s291, 1
        %s1511 = smul.addr %s1510, 8
        %s1512 = scalar_lea.vmem [#allocation2], %s1511
        // Predicated region
        $region69: #{tpu_custom_call.1} parent=67 // pred_check
          %p1513 = pneg %p301
        $region70: #{tpu_custom_call.1} parent=67 // pred_check_branch
          %1515 = sbr.rel (%p1513) target = $region72
        $region71: #{tpu_custom_call.1} parent=67 // pred_region
          %s1517 = ssub.s32 128, 128
          %1518 = vsyncadd %s1509, %s1517
          %s1519 = smul.addr %s26, 128
          %s1520 = scalar_lea.hbm %s12, %s1519
          %s1522 = sshll.u32 %s1512, 4
          %s1523 = int_to_ptr.vmem [resolvable:$true] %s1522
          %1525 = dma.vmem_to_hbm [thread:$0]  %s1523, 128, %s1520, %s1509
        $region72: #{tpu_custom_call.1} parent=67 // pred_fallthru
          _
      $region68: #{tpu_custom_call.1} parent=5 // pred_fallthru
        _
      %p1526 = scmp.le.s32.totalorder 2, %s21
      // Predicated region
      $region73: #{tpu_custom_call.1} parent=5 // pred_check
        %p1527 = pneg %p1526
      $region74: #{tpu_custom_call.1} parent=5 // pred_check_branch
        %1529 = sbr.rel (%p1527) target = $region76
      $region75: #{tpu_custom_call.1} parent=5 // pred_region
        %s1530 = ssub.s32 %s21, 2
        // Predicated region
        $region77: #{tpu_custom_call.1} parent=75 // pred_check
          %p1531 = pneg %p307
        $region78: #{tpu_custom_call.1} parent=75 // pred_check_branch
          %1533 = sbr.rel (%p1531) target = $region80
        $region79: #{tpu_custom_call.1} parent=75 // pred_region
          %s1534 = sand.u32 %s292, 1
          %s1535 = scalar_lea.sflag [#allocation3], %s1534
          %s1536 = sand.u32 %s292, 1
          %s1537 = smul.addr %s1536, 8
          %s1538 = scalar_lea.vmem [#allocation2], %s1537
          %1539 = dma.done %s1535, 128
        $region80: #{tpu_custom_call.1} parent=75 // pred_fallthru
          _
      $region76: #{tpu_custom_call.1} parent=5 // pred_fallthru
        _
    $region6: #{tpu_custom_call.1} parent=1 // loop_footer
      %s25 = sadd.s32 1, %s21
    $region7: #{tpu_custom_call.1} parent=1 // loop_footer_branch
      %20 = sbr.rel target = $region3
    $region8: #{tpu_custom_call.1} parent=1 // loop_exit
      _
    %1540 = vsyncpa [#allocation3], 1
    %s1541 = scalar_lea.sflag [#allocation3], 1
    %1542 = vsyncpa %s1541, 1

</llo_original>
